<compile_context>
chip_gen: v6e
topology: v6e:2x2x1
jax: 0.10.0
libtpu: 0.0.40
codegen_flags: <defaults>
</compile_context>

<pallas_src>
import functools

import jax
import jax.numpy as jnp
from jax.experimental import pallas as pl
from jax.experimental.pallas import tpu as pltpu

K = 7          # conv kernel size
KK = K * K     # 49 taps
PAD = 3        # conv padding
C_MID = 64     # hidden channels
EPS = 1e-5     # InstanceNorm2d default eps


def _round_up(x, m):
    return ((x + m - 1) // m) * m


def _generator_kernel(h, w, x_ref, mask_ref, w1_ref, w2t_ref, o_ref,
                      xcol_ref, pte_ref):
    """Fused conv1 -> InstanceNorm -> ReLU -> conv2 -> tanh for one image."""
    wp = w + 2 * PAD                  # padded frame width
    q = (h + 2 * PAD) * wp            # frame-flat size (includes 3-pixel ring)
    b = PAD * wp + PAD                # magnitude of the most-negative tap shift
    off = _round_up(b, 128)           # lane-aligned zero extension on each side

    # Zero the conv2 staging buffer's lane extensions once; the center region
    # is fully rewritten every grid step, the extensions never are.
    @pl.when(pl.program_id(0) == 0)
    def _():
        pte_ref[...] = jnp.zeros(pte_ref.shape, jnp.float32)

    xrow = x_ref[0]                   # (1, q + 2*off) zero-extended frame-flat input
    mask = mask_ref[0]                # (1, q)  1.0 at interior (real image) pixels

    # ---- conv1: build the 49-row shifted-patch matrix in VMEM scratch, then
    #      one MXU matmul (64,49) @ (49,q).  No HBM im2col. ----
    for t in range(KK):
        di, dj = divmod(t, K)
        s = off - b + di * wp + dj                      # static lane offset
        xcol_ref[pl.ds(t, 1), :] = xrow[:, s:s + q]     # (1, q)
    c1 = jnp.dot(w1_ref[...], xcol_ref[...],
                 preferred_element_type=jnp.float32)    # (64, q)

    # ---- InstanceNorm (single pass: E[x^2] - mean^2) + ReLU.
    #      Stats over the H*W interior pixels only; the ring is forced back to
    #      zero so it acts as conv2's zero padding. ----
    inv_n = 1.0 / float(h * w)
    c1m = c1 * mask
    mean = jnp.sum(c1m, axis=1, keepdims=True) * inv_n          # (64, 1)
    ex2 = jnp.sum(c1m * c1, axis=1, keepdims=True) * inv_n      # (64, 1)
    inv_std = jax.lax.rsqrt(ex2 - mean * mean + EPS)
    feat = jnp.maximum((c1 - mean) * inv_std, 0.0) * mask       # (64, q)

    # ---- conv2 via the P-trick: one MXU matmul for the channel contraction at
    #      every frame position, then 49 static lane-shifted adds. ----
    pt = jnp.dot(w2t_ref[...], feat,
                 preferred_element_type=jnp.float32)            # (49, q)
    pte_ref[:, pl.ds(off, q)] = pt                              # aligned center store
    acc = jnp.zeros((1, q), jnp.float32)
    for t in range(KK):
        di, dj = divmod(t, K)
        s = off - b + di * wp + dj
        acc = acc + pte_ref[pl.ds(t, 1), pl.ds(s, q)]           # (1, q)

    o_ref[0] = jnp.tanh(acc)                                    # lane-dense store


@jax.jit
def generator_forward(x_nchw, w1, w2):
    """x_nchw: (N, 1, H, W) float32.
    w1: (64, 1, 7, 7)  PyTorch layout (cout, cin, kh, kw)
    w2: (1, 64, 7, 7)
    returns: (N, 1, H, W)
    """
    n, cin, h, w = x_nchw.shape
    assert cin == 1
    hp, wp = h + 2 * PAD, w + 2 * PAD
    q = hp * wp
    b = PAD * wp + PAD
    off = _round_up(b, 128)
    l = q + 2 * off

    # Tiny glue: zero-pad the 1-channel input spatially, flatten the frame and
    # extend with `off` zero lanes per side so all tap slices stay in-bounds.
    x_img = x_nchw[:, 0, :, :].astype(jnp.float32)                       # (N, H, W)
    xpad = jnp.pad(x_img, ((0, 0), (PAD, PAD), (PAD, PAD)))              # (N, Hp, Wp)
    xext = jnp.pad(xpad.reshape(n, 1, q), ((0, 0), (0, 0), (off, off)))  # (N, 1, L)

    # Interior (real-pixel) mask over frame-flat positions, shared by all images.
    rr = jnp.arange(hp)[:, None]
    cc = jnp.arange(wp)[None, :]
    interior = (rr >= PAD) & (rr < PAD + h) & (cc >= PAD) & (cc < PAD + w)
    mask = interior.astype(jnp.float32).reshape(1, 1, q)

    # Weights: (cout, cin, kh, kw) -> matmul layouts.
    w1m = w1.reshape(C_MID, KK).astype(jnp.float32)        # (64, 49)
    w2t = w2.reshape(C_MID, KK).T.astype(jnp.float32)      # (49, 64)

    kernel = functools.partial(_generator_kernel, h, w)
    out_flat = pl.pallas_call(
        kernel,
        out_shape=jax.ShapeDtypeStruct((n, 1, q), jnp.float32),
        grid_spec=pltpu.PrefetchScalarGridSpec(
            num_scalar_prefetch=0,
            grid=(n,),
            in_specs=[
                pl.BlockSpec((1, 1, l), lambda i: (i, 0, 0)),        # extended input
                pl.BlockSpec((1, 1, q), lambda i: (0, 0, 0)),        # interior mask
                pl.BlockSpec((C_MID, KK), lambda i: (0, 0)),         # conv1 weights
                pl.BlockSpec((KK, C_MID), lambda i: (0, 0)),         # conv2 weights^T
            ],
            out_specs=pl.BlockSpec((1, 1, q), lambda i: (i, 0, 0)),
            scratch_shapes=[
                pltpu.VMEM((KK, q), jnp.float32),    # conv1 patch matrix
                pltpu.VMEM((KK, l), jnp.float32),    # zero-extended P matrix
            ],
        ),
        compiler_params=pltpu.CompilerParams(
            dimension_semantics=("parallel",)),
    )(xext, mask, w1m, w2t)

    # Crop the 3-pixel ring and return NCHW.
    out = out_flat.reshape(n, hp, wp)[:, PAD:PAD + h, PAD:PAD + w]
    return out.reshape(n, 1, h, w)


def _reference_forward(x_nchw, w1, w2):
    """Pure-JAX reference (lax.conv, HIGHEST precision) for sanity checking."""
    dn = jax.lax.conv_dimension_numbers(x_nchw.shape, w1.shape,
                                        ("NCHW", "OIHW", "NCHW"))
    y = jax.lax.conv_general_dilated(x_nchw, w1, (1, 1),
                                     [(PAD, PAD), (PAD, PAD)],
                                     dimension_numbers=dn,
                                     precision=jax.lax.Precision.HIGHEST)
    mean = jnp.mean(y, axis=(2, 3), keepdims=True)
    var = jnp.mean((y - mean) ** 2, axis=(2, 3), keepdims=True)
    y = jnp.maximum((y - mean) * jax.lax.rsqrt(var + EPS), 0.0)
    dn2 = jax.lax.conv_dimension_numbers(y.shape, w2.shape,
                                         ("NCHW", "OIHW", "NCHW"))
    z = jax.lax.conv_general_dilated(y, w2, (1, 1),
                                     [(PAD, PAD), (PAD, PAD)],
                                     dimension_numbers=dn2,
                                     precision=jax.lax.Precision.HIGHEST)
    return jnp.tanh(z)


if __name__ == "__main__":
    key = jax.random.PRNGKey(0)
    k_x, k_w1, k_w2 = jax.random.split(key, 3)

    N, H, W = 2, 16, 16
    x = jax.random.normal(k_x, (N, 1, H, W), dtype=jnp.float32)

    # Deterministic synthetic weights (PyTorch Conv2d layout: cout, cin, kh, kw)
    w1 = 0.05 * jax.random.normal(k_w1, (C_MID, 1, K, K), dtype=jnp.float32)
    w2 = 0.05 * jax.random.normal(k_w2, (1, C_MID, K, K), dtype=jnp.float32)

    out = jax.block_until_ready(generator_forward(x, w1, w2))
    assert out.shape == (N, 1, H, W), out.shape

    ref = jax.block_until_ready(_reference_forward(x, w1, w2))
    max_err = float(jnp.max(jnp.abs(out - ref)))
    assert max_err < 5e-3, f"max_err={max_err}"

    print("KERNEL_OK")
</pallas_src>

<mosaic_0001>
module attributes {stable_mosaic.version = 11 : i64} {
  func.func @_generator_kernel(%arg0: i32, %arg1: memref<1x1x740xf32, #tpu.memory_space<vmem>>, %arg2: memref<1x1x484xf32, #tpu.memory_space<vmem>>, %arg3: memref<64x49xf32, #tpu.memory_space<vmem>>, %arg4: memref<49x64xf32, #tpu.memory_space<vmem>>, %arg5: memref<1x1x484xf32, #tpu.memory_space<vmem>>, %arg6: memref<49x484xf32, #tpu.memory_space<vmem>>, %arg7: memref<49x740xf32, #tpu.memory_space<vmem>>) attributes {dimension_semantics = [#tpu.dimension_semantics<parallel>], iteration_bounds = array<i64: 2>, scalar_prefetch = 0 : i64, scratch_operands = 2 : i64, tpu.core_type = #tpu.core_type<tc>, window_params = [{transform_indices = @transform_0, window_bounds = array<i64: 1, 1, 740>}, {pipeline_mode = #tpu.pipeline_mode<synchronous>, transform_indices = @transform_1, window_bounds = array<i64: 1, 1, 484>}, {pipeline_mode = #tpu.pipeline_mode<synchronous>, transform_indices = @transform_2, window_bounds = array<i64: 64, 49>}, {pipeline_mode = #tpu.pipeline_mode<synchronous>, transform_indices = @transform_3, window_bounds = array<i64: 49, 64>}, {transform_indices = @transform_4, window_bounds = array<i64: 1, 1, 484>}]} {
    %c0_i32 = arith.constant 0 : i32
    %0 = arith.cmpi eq, %arg0, %c0_i32 : i32
    %1 = arith.extui %0 : i1 to i32
    %c0_i32_0 = arith.constant 0 : i32
    %2 = arith.cmpi ne, %1, %c0_i32_0 : i32
    scf.if %2 {
      %cst_124 = arith.constant 0.000000e+00 : f32
      %238 = vector.broadcast %cst_124 : f32 to vector<49x740xf32>
      %c0_125 = arith.constant 0 : index
      %c0_126 = arith.constant 0 : index
      %239 = vector.load %arg7[%c0_125, %c0_126] : memref<49x740xf32, #tpu.memory_space<vmem>>, vector<49x740xf32>
      tpu.vector_store %arg7[%c0_125, %c0_126], %238 {strides = array<i32>} : memref<49x740xf32, #tpu.memory_space<vmem>>, vector<49x740xf32>,
    } else {
    }
    %c0 = arith.constant 0 : index
    %c0_1 = arith.constant 0 : index
    %c0_2 = arith.constant 0 : index
    %3 = vector.load %arg1[%c0, %c0_1, %c0_2] : memref<1x1x740xf32, #tpu.memory_space<vmem>>, vector<1x1x740xf32>
    %4 = vector.shape_cast %3 : vector<1x1x740xf32> to vector<1x740xf32>
    %c0_3 = arith.constant 0 : index
    %c0_4 = arith.constant 0 : index
    %c0_5 = arith.constant 0 : index
    %5 = vector.load %arg2[%c0_3, %c0_4, %c0_5] : memref<1x1x484xf32, #tpu.memory_space<vmem>>, vector<1x1x484xf32>
    %6 = vector.shape_cast %5 : vector<1x1x484xf32> to vector<1x484xf32>
    %7 = vector.extract_strided_slice %4 {offsets = [0, 59], sizes = [1, 484], strides = [1, 1]} : vector<1x740xf32> to vector<1x484xf32>
    %c0_6 = arith.constant 0 : index
    %c0_7 = arith.constant 0 : index
    %8 = vector.load %arg6[%c0_6, %c0_7] : memref<49x484xf32, #tpu.memory_space<vmem>>, vector<1x484xf32>
    tpu.vector_store %arg6[%c0_6, %c0_7], %7 {strides = array<i32>} : memref<49x484xf32, #tpu.memory_space<vmem>>, vector<1x484xf32>,
    %9 = vector.extract_strided_slice %4 {offsets = [0, 60], sizes = [1, 484], strides = [1, 1]} : vector<1x740xf32> to vector<1x484xf32>
    %c1 = arith.constant 1 : index
    %c0_8 = arith.constant 0 : index
    %10 = vector.load %arg6[%c1, %c0_8] : memref<49x484xf32, #tpu.memory_space<vmem>>, vector<1x484xf32>
    tpu.vector_store %arg6[%c1, %c0_8], %9 {strides = array<i32>} : memref<49x484xf32, #tpu.memory_space<vmem>>, vector<1x484xf32>,
    %11 = vector.extract_strided_slice %4 {offsets = [0, 61], sizes = [1, 484], strides = [1, 1]} : vector<1x740xf32> to vector<1x484xf32>
    %c2 = arith.constant 2 : index
    %c0_9 = arith.constant 0 : index
    %12 = vector.load %arg6[%c2, %c0_9] : memref<49x484xf32, #tpu.memory_space<vmem>>, vector<1x484xf32>
    tpu.vector_store %arg6[%c2, %c0_9], %11 {strides = array<i32>} : memref<49x484xf32, #tpu.memory_space<vmem>>, vector<1x484xf32>,
    %13 = vector.extract_strided_slice %4 {offsets = [0, 62], sizes = [1, 484], strides = [1, 1]} : vector<1x740xf32> to vector<1x484xf32>
    %c3 = arith.constant 3 : index
    %c0_10 = arith.constant 0 : index
    %14 = vector.load %arg6[%c3, %c0_10] : memref<49x484xf32, #tpu.memory_space<vmem>>, vector<1x484xf32>
    tpu.vector_store %arg6[%c3, %c0_10], %13 {strides = array<i32>} : memref<49x484xf32, #tpu.memory_space<vmem>>, vector<1x484xf32>,
    %15 = vector.extract_strided_slice %4 {offsets = [0, 63], sizes = [1, 484], strides = [1, 1]} : vector<1x740xf32> to vector<1x484xf32>
    %c4 = arith.constant 4 : index
    %c0_11 = arith.constant 0 : index
    %16 = vector.load %arg6[%c4, %c0_11] : memref<49x484xf32, #tpu.memory_space<vmem>>, vector<1x484xf32>
    tpu.vector_store %arg6[%c4, %c0_11], %15 {strides = array<i32>} : memref<49x484xf32, #tpu.memory_space<vmem>>, vector<1x484xf32>,
    %17 = vector.extract_strided_slice %4 {offsets = [0, 64], sizes = [1, 484], strides = [1, 1]} : vector<1x740xf32> to vector<1x484xf32>
    %c5 = arith.constant 5 : index
    %c0_12 = arith.constant 0 : index
    %18 = vector.load %arg6[%c5, %c0_12] : memref<49x484xf32, #tpu.memory_space<vmem>>, vector<1x484xf32>
    tpu.vector_store %arg6[%c5, %c0_12], %17 {strides = array<i32>} : memref<49x484xf32, #tpu.memory_space<vmem>>, vector<1x484xf32>,
    %19 = vector.extract_strided_slice %4 {offsets = [0, 65], sizes = [1, 484], strides = [1, 1]} : vector<1x740xf32> to vector<1x484xf32>
    %c6 = arith.constant 6 : index
    %c0_13 = arith.constant 0 : index
    %20 = vector.load %arg6[%c6, %c0_13] : memref<49x484xf32, #tpu.memory_space<vmem>>, vector<1x484xf32>
    tpu.vector_store %arg6[%c6, %c0_13], %19 {strides = array<i32>} : memref<49x484xf32, #tpu.memory_space<vmem>>, vector<1x484xf32>,
    %21 = vector.extract_strided_slice %4 {offsets = [0, 81], sizes = [1, 484], strides = [1, 1]} : vector<1x740xf32> to vector<1x484xf32>
    %c7 = arith.constant 7 : index
    %c0_14 = arith.constant 0 : index
    %22 = vector.load %arg6[%c7, %c0_14] : memref<49x484xf32, #tpu.memory_space<vmem>>, vector<1x484xf32>
    tpu.vector_store %arg6[%c7, %c0_14], %21 {strides = array<i32>} : memref<49x484xf32, #tpu.memory_space<vmem>>, vector<1x484xf32>,
    %23 = vector.extract_strided_slice %4 {offsets = [0, 82], sizes = [1, 484], strides = [1, 1]} : vector<1x740xf32> to vector<1x484xf32>
    %c8 = arith.constant 8 : index
    %c0_15 = arith.constant 0 : index
    %24 = vector.load %arg6[%c8, %c0_15] : memref<49x484xf32, #tpu.memory_space<vmem>>, vector<1x484xf32>
    tpu.vector_store %arg6[%c8, %c0_15], %23 {strides = array<i32>} : memref<49x484xf32, #tpu.memory_space<vmem>>, vector<1x484xf32>,
    %25 = vector.extract_strided_slice %4 {offsets = [0, 83], sizes = [1, 484], strides = [1, 1]} : vector<1x740xf32> to vector<1x484xf32>
    %c9 = arith.constant 9 : index
    %c0_16 = arith.constant 0 : index
    %26 = vector.load %arg6[%c9, %c0_16] : memref<49x484xf32, #tpu.memory_space<vmem>>, vector<1x484xf32>
    tpu.vector_store %arg6[%c9, %c0_16], %25 {strides = array<i32>} : memref<49x484xf32, #tpu.memory_space<vmem>>, vector<1x484xf32>,
    %27 = vector.extract_strided_slice %4 {offsets = [0, 84], sizes = [1, 484], strides = [1, 1]} : vector<1x740xf32> to vector<1x484xf32>
    %c10 = arith.constant 10 : index
    %c0_17 = arith.constant 0 : index
    %28 = vector.load %arg6[%c10, %c0_17] : memref<49x484xf32, #tpu.memory_space<vmem>>, vector<1x484xf32>
    tpu.vector_store %arg6[%c10, %c0_17], %27 {strides = array<i32>} : memref<49x484xf32, #tpu.memory_space<vmem>>, vector<1x484xf32>,
    %29 = vector.extract_strided_slice %4 {offsets = [0, 85], sizes = [1, 484], strides = [1, 1]} : vector<1x740xf32> to vector<1x484xf32>
    %c11 = arith.constant 11 : index
    %c0_18 = arith.constant 0 : index
    %30 = vector.load %arg6[%c11, %c0_18] : memref<49x484xf32, #tpu.memory_space<vmem>>, vector<1x484xf32>
    tpu.vector_store %arg6[%c11, %c0_18], %29 {strides = array<i32>} : memref<49x484xf32, #tpu.memory_space<vmem>>, vector<1x484xf32>,
    %31 = vector.extract_strided_slice %4 {offsets = [0, 86], sizes = [1, 484], strides = [1, 1]} : vector<1x740xf32> to vector<1x484xf32>
    %c12 = arith.constant 12 : index
    %c0_19 = arith.constant 0 : index
    %32 = vector.load %arg6[%c12, %c0_19] : memref<49x484xf32, #tpu.memory_space<vmem>>, vector<1x484xf32>
    tpu.vector_store %arg6[%c12, %c0_19], %31 {strides = array<i32>} : memref<49x484xf32, #tpu.memory_space<vmem>>, vector<1x484xf32>,
    %33 = vector.extract_strided_slice %4 {offsets = [0, 87], sizes = [1, 484], strides = [1, 1]} : vector<1x740xf32> to vector<1x484xf32>
    %c13 = arith.constant 13 : index
    %c0_20 = arith.constant 0 : index
    %34 = vector.load %arg6[%c13, %c0_20] : memref<49x484xf32, #tpu.memory_space<vmem>>, vector<1x484xf32>
    tpu.vector_store %arg6[%c13, %c0_20], %33 {strides = array<i32>} : memref<49x484xf32, #tpu.memory_space<vmem>>, vector<1x484xf32>,
    %35 = vector.extract_strided_slice %4 {offsets = [0, 103], sizes = [1, 484], strides = [1, 1]} : vector<1x740xf32> to vector<1x484xf32>
    %c14 = arith.constant 14 : index
    %c0_21 = arith.constant 0 : index
    %36 = vector.load %arg6[%c14, %c0_21] : memref<49x484xf32, #tpu.memory_space<vmem>>, vector<1x484xf32>
    tpu.vector_store %arg6[%c14, %c0_21], %35 {strides = array<i32>} : memref<49x484xf32, #tpu.memory_space<vmem>>, vector<1x484xf32>,
    %37 = vector.extract_strided_slice %4 {offsets = [0, 104], sizes = [1, 484], strides = [1, 1]} : vector<1x740xf32> to vector<1x484xf32>
    %c15 = arith.constant 15 : index
    %c0_22 = arith.constant 0 : index
    %38 = vector.load %arg6[%c15, %c0_22] : memref<49x484xf32, #tpu.memory_space<vmem>>, vector<1x484xf32>
    tpu.vector_store %arg6[%c15, %c0_22], %37 {strides = array<i32>} : memref<49x484xf32, #tpu.memory_space<vmem>>, vector<1x484xf32>,
    %39 = vector.extract_strided_slice %4 {offsets = [0, 105], sizes = [1, 484], strides = [1, 1]} : vector<1x740xf32> to vector<1x484xf32>
    %c16 = arith.constant 16 : index
    %c0_23 = arith.constant 0 : index
    %40 = vector.load %arg6[%c16, %c0_23] : memref<49x484xf32, #tpu.memory_space<vmem>>, vector<1x484xf32>
    tpu.vector_store %arg6[%c16, %c0_23], %39 {strides = array<i32>} : memref<49x484xf32, #tpu.memory_space<vmem>>, vector<1x484xf32>,
    %41 = vector.extract_strided_slice %4 {offsets = [0, 106], sizes = [1, 484], strides = [1, 1]} : vector<1x740xf32> to vector<1x484xf32>
    %c17 = arith.constant 17 : index
    %c0_24 = arith.constant 0 : index
    %42 = vector.load %arg6[%c17, %c0_24] : memref<49x484xf32, #tpu.memory_space<vmem>>, vector<1x484xf32>
    tpu.vector_store %arg6[%c17, %c0_24], %41 {strides = array<i32>} : memref<49x484xf32, #tpu.memory_space<vmem>>, vector<1x484xf32>,
    %43 = vector.extract_strided_slice %4 {offsets = [0, 107], sizes = [1, 484], strides = [1, 1]} : vector<1x740xf32> to vector<1x484xf32>
    %c18 = arith.constant 18 : index
    %c0_25 = arith.constant 0 : index
    %44 = vector.load %arg6[%c18, %c0_25] : memref<49x484xf32, #tpu.memory_space<vmem>>, vector<1x484xf32>
    tpu.vector_store %arg6[%c18, %c0_25], %43 {strides = array<i32>} : memref<49x484xf32, #tpu.memory_space<vmem>>, vector<1x484xf32>,
    %45 = vector.extract_strided_slice %4 {offsets = [0, 108], sizes = [1, 484], strides = [1, 1]} : vector<1x740xf32> to vector<1x484xf32>
    %c19 = arith.constant 19 : index
    %c0_26 = arith.constant 0 : index
    %46 = vector.load %arg6[%c19, %c0_26] : memref<49x484xf32, #tpu.memory_space<vmem>>, vector<1x484xf32>
    tpu.vector_store %arg6[%c19, %c0_26], %45 {strides = array<i32>} : memref<49x484xf32, #tpu.memory_space<vmem>>, vector<1x484xf32>,
    %47 = vector.extract_strided_slice %4 {offsets = [0, 109], sizes = [1, 484], strides = [1, 1]} : vector<1x740xf32> to vector<1x484xf32>
    %c20 = arith.constant 20 : index
    %c0_27 = arith.constant 0 : index
    %48 = vector.load %arg6[%c20, %c0_27] : memref<49x484xf32, #tpu.memory_space<vmem>>, vector<1x484xf32>
    tpu.vector_store %arg6[%c20, %c0_27], %47 {strides = array<i32>} : memref<49x484xf32, #tpu.memory_space<vmem>>, vector<1x484xf32>,
    %49 = vector.extract_strided_slice %4 {offsets = [0, 125], sizes = [1, 484], strides = [1, 1]} : vector<1x740xf32> to vector<1x484xf32>
    %c21 = arith.constant 21 : index
    %c0_28 = arith.constant 0 : index
    %50 = vector.load %arg6[%c21, %c0_28] : memref<49x484xf32, #tpu.memory_space<vmem>>, vector<1x484xf32>
    tpu.vector_store %arg6[%c21, %c0_28], %49 {strides = array<i32>} : memref<49x484xf32, #tpu.memory_space<vmem>>, vector<1x484xf32>,
    %51 = vector.extract_strided_slice %4 {offsets = [0, 126], sizes = [1, 484], strides = [1, 1]} : vector<1x740xf32> to vector<1x484xf32>
    %c22 = arith.constant 22 : index
    %c0_29 = arith.constant 0 : index
    %52 = vector.load %arg6[%c22, %c0_29] : memref<49x484xf32, #tpu.memory_space<vmem>>, vector<1x484xf32>
    tpu.vector_store %arg6[%c22, %c0_29], %51 {strides = array<i32>} : memref<49x484xf32, #tpu.memory_space<vmem>>, vector<1x484xf32>,
    %53 = vector.extract_strided_slice %4 {offsets = [0, 127], sizes = [1, 484], strides = [1, 1]} : vector<1x740xf32> to vector<1x484xf32>
    %c23 = arith.constant 23 : index
    %c0_30 = arith.constant 0 : index
    %54 = vector.load %arg6[%c23, %c0_30] : memref<49x484xf32, #tpu.memory_space<vmem>>, vector<1x484xf32>
    tpu.vector_store %arg6[%c23, %c0_30], %53 {strides = array<i32>} : memref<49x484xf32, #tpu.memory_space<vmem>>, vector<1x484xf32>,
    %55 = vector.extract_strided_slice %4 {offsets = [0, 128], sizes = [1, 484], strides = [1, 1]} : vector<1x740xf32> to vector<1x484xf32>
    %c24 = arith.constant 24 : index
    %c0_31 = arith.constant 0 : index
    %56 = vector.load %arg6[%c24, %c0_31] : memref<49x484xf32, #tpu.memory_space<vmem>>, vector<1x484xf32>
    tpu.vector_store %arg6[%c24, %c0_31], %55 {strides = array<i32>} : memref<49x484xf32, #tpu.memory_space<vmem>>, vector<1x484xf32>,
    %57 = vector.extract_strided_slice %4 {offsets = [0, 129], sizes = [1, 484], strides = [1, 1]} : vector<1x740xf32> to vector<1x484xf32>
    %c25 = arith.constant 25 : index
    %c0_32 = arith.constant 0 : index
    %58 = vector.load %arg6[%c25, %c0_32] : memref<49x484xf32, #tpu.memory_space<vmem>>, vector<1x484xf32>
    tpu.vector_store %arg6[%c25, %c0_32], %57 {strides = array<i32>} : memref<49x484xf32, #tpu.memory_space<vmem>>, vector<1x484xf32>,
    %59 = vector.extract_strided_slice %4 {offsets = [0, 130], sizes = [1, 484], strides = [1, 1]} : vector<1x740xf32> to vector<1x484xf32>
    %c26 = arith.constant 26 : index
    %c0_33 = arith.constant 0 : index
    %60 = vector.load %arg6[%c26, %c0_33] : memref<49x484xf32, #tpu.memory_space<vmem>>, vector<1x484xf32>
    tpu.vector_store %arg6[%c26, %c0_33], %59 {strides = array<i32>} : memref<49x484xf32, #tpu.memory_space<vmem>>, vector<1x484xf32>,
    %61 = vector.extract_strided_slice %4 {offsets = [0, 131], sizes = [1, 484], strides = [1, 1]} : vector<1x740xf32> to vector<1x484xf32>
    %c27 = arith.constant 27 : index
    %c0_34 = arith.constant 0 : index
    %62 = vector.load %arg6[%c27, %c0_34] : memref<49x484xf32, #tpu.memory_space<vmem>>, vector<1x484xf32>
    tpu.vector_store %arg6[%c27, %c0_34], %61 {strides = array<i32>} : memref<49x484xf32, #tpu.memory_space<vmem>>, vector<1x484xf32>,
    %63 = vector.extract_strided_slice %4 {offsets = [0, 147], sizes = [1, 484], strides = [1, 1]} : vector<1x740xf32> to vector<1x484xf32>
    %c28 = arith.constant 28 : index
    %c0_35 = arith.constant 0 : index
    %64 = vector.load %arg6[%c28, %c0_35] : memref<49x484xf32, #tpu.memory_space<vmem>>, vector<1x484xf32>
    tpu.vector_store %arg6[%c28, %c0_35], %63 {strides = array<i32>} : memref<49x484xf32, #tpu.memory_space<vmem>>, vector<1x484xf32>,
    %65 = vector.extract_strided_slice %4 {offsets = [0, 148], sizes = [1, 484], strides = [1, 1]} : vector<1x740xf32> to vector<1x484xf32>
    %c29 = arith.constant 29 : index
    %c0_36 = arith.constant 0 : index
    %66 = vector.load %arg6[%c29, %c0_36] : memref<49x484xf32, #tpu.memory_space<vmem>>, vector<1x484xf32>
    tpu.vector_store %arg6[%c29, %c0_36], %65 {strides = array<i32>} : memref<49x484xf32, #tpu.memory_space<vmem>>, vector<1x484xf32>,
    %67 = vector.extract_strided_slice %4 {offsets = [0, 149], sizes = [1, 484], strides = [1, 1]} : vector<1x740xf32> to vector<1x484xf32>
    %c30 = arith.constant 30 : index
    %c0_37 = arith.constant 0 : index
    %68 = vector.load %arg6[%c30, %c0_37] : memref<49x484xf32, #tpu.memory_space<vmem>>, vector<1x484xf32>
    tpu.vector_store %arg6[%c30, %c0_37], %67 {strides = array<i32>} : memref<49x484xf32, #tpu.memory_space<vmem>>, vector<1x484xf32>,
    %69 = vector.extract_strided_slice %4 {offsets = [0, 150], sizes = [1, 484], strides = [1, 1]} : vector<1x740xf32> to vector<1x484xf32>
    %c31 = arith.constant 31 : index
    %c0_38 = arith.constant 0 : index
    %70 = vector.load %arg6[%c31, %c0_38] : memref<49x484xf32, #tpu.memory_space<vmem>>, vector<1x484xf32>
    tpu.vector_store %arg6[%c31, %c0_38], %69 {strides = array<i32>} : memref<49x484xf32, #tpu.memory_space<vmem>>, vector<1x484xf32>,
    %71 = vector.extract_strided_slice %4 {offsets = [0, 151], sizes = [1, 484], strides = [1, 1]} : vector<1x740xf32> to vector<1x484xf32>
    %c32 = arith.constant 32 : index
    %c0_39 = arith.constant 0 : index
    %72 = vector.load %arg6[%c32, %c0_39] : memref<49x484xf32, #tpu.memory_space<vmem>>, vector<1x484xf32>
    tpu.vector_store %arg6[%c32, %c0_39], %71 {strides = array<i32>} : memref<49x484xf32, #tpu.memory_space<vmem>>, vector<1x484xf32>,
    %73 = vector.extract_strided_slice %4 {offsets = [0, 152], sizes = [1, 484], strides = [1, 1]} : vector<1x740xf32> to vector<1x484xf32>
    %c33 = arith.constant 33 : index
    %c0_40 = arith.constant 0 : index
    %74 = vector.load %arg6[%c33, %c0_40] : memref<49x484xf32, #tpu.memory_space<vmem>>, vector<1x484xf32>
    tpu.vector_store %arg6[%c33, %c0_40], %73 {strides = array<i32>} : memref<49x484xf32, #tpu.memory_space<vmem>>, vector<1x484xf32>,
    %75 = vector.extract_strided_slice %4 {offsets = [0, 153], sizes = [1, 484], strides = [1, 1]} : vector<1x740xf32> to vector<1x484xf32>
    %c34 = arith.constant 34 : index
    %c0_41 = arith.constant 0 : index
    %76 = vector.load %arg6[%c34, %c0_41] : memref<49x484xf32, #tpu.memory_space<vmem>>, vector<1x484xf32>
    tpu.vector_store %arg6[%c34, %c0_41], %75 {strides = array<i32>} : memref<49x484xf32, #tpu.memory_space<vmem>>, vector<1x484xf32>,
    %77 = vector.extract_strided_slice %4 {offsets = [0, 169], sizes = [1, 484], strides = [1, 1]} : vector<1x740xf32> to vector<1x484xf32>
    %c35 = arith.constant 35 : index
    %c0_42 = arith.constant 0 : index
    %78 = vector.load %arg6[%c35, %c0_42] : memref<49x484xf32, #tpu.memory_space<vmem>>, vector<1x484xf32>
    tpu.vector_store %arg6[%c35, %c0_42], %77 {strides = array<i32>} : memref<49x484xf32, #tpu.memory_space<vmem>>, vector<1x484xf32>,
    %79 = vector.extract_strided_slice %4 {offsets = [0, 170], sizes = [1, 484], strides = [1, 1]} : vector<1x740xf32> to vector<1x484xf32>
    %c36 = arith.constant 36 : index
    %c0_43 = arith.constant 0 : index
    %80 = vector.load %arg6[%c36, %c0_43] : memref<49x484xf32, #tpu.memory_space<vmem>>, vector<1x484xf32>
    tpu.vector_store %arg6[%c36, %c0_43], %79 {strides = array<i32>} : memref<49x484xf32, #tpu.memory_space<vmem>>, vector<1x484xf32>,
    %81 = vector.extract_strided_slice %4 {offsets = [0, 171], sizes = [1, 484], strides = [1, 1]} : vector<1x740xf32> to vector<1x484xf32>
    %c37 = arith.constant 37 : index
    %c0_44 = arith.constant 0 : index
    %82 = vector.load %arg6[%c37, %c0_44] : memref<49x484xf32, #tpu.memory_space<vmem>>, vector<1x484xf32>
    tpu.vector_store %arg6[%c37, %c0_44], %81 {strides = array<i32>} : memref<49x484xf32, #tpu.memory_space<vmem>>, vector<1x484xf32>,
    %83 = vector.extract_strided_slice %4 {offsets = [0, 172], sizes = [1, 484], strides = [1, 1]} : vector<1x740xf32> to vector<1x484xf32>
    %c38 = arith.constant 38 : index
    %c0_45 = arith.constant 0 : index
    %84 = vector.load %arg6[%c38, %c0_45] : memref<49x484xf32, #tpu.memory_space<vmem>>, vector<1x484xf32>
    tpu.vector_store %arg6[%c38, %c0_45], %83 {strides = array<i32>} : memref<49x484xf32, #tpu.memory_space<vmem>>, vector<1x484xf32>,
    %85 = vector.extract_strided_slice %4 {offsets = [0, 173], sizes = [1, 484], strides = [1, 1]} : vector<1x740xf32> to vector<1x484xf32>
    %c39 = arith.constant 39 : index
    %c0_46 = arith.constant 0 : index
    %86 = vector.load %arg6[%c39, %c0_46] : memref<49x484xf32, #tpu.memory_space<vmem>>, vector<1x484xf32>
    tpu.vector_store %arg6[%c39, %c0_46], %85 {strides = array<i32>} : memref<49x484xf32, #tpu.memory_space<vmem>>, vector<1x484xf32>,
    %87 = vector.extract_strided_slice %4 {offsets = [0, 174], sizes = [1, 484], strides = [1, 1]} : vector<1x740xf32> to vector<1x484xf32>
    %c40 = arith.constant 40 : index
    %c0_47 = arith.constant 0 : index
    %88 = vector.load %arg6[%c40, %c0_47] : memref<49x484xf32, #tpu.memory_space<vmem>>, vector<1x484xf32>
    tpu.vector_store %arg6[%c40, %c0_47], %87 {strides = array<i32>} : memref<49x484xf32, #tpu.memory_space<vmem>>, vector<1x484xf32>,
    %89 = vector.extract_strided_slice %4 {offsets = [0, 175], sizes = [1, 484], strides = [1, 1]} : vector<1x740xf32> to vector<1x484xf32>
    %c41 = arith.constant 41 : index
    %c0_48 = arith.constant 0 : index
    %90 = vector.load %arg6[%c41, %c0_48] : memref<49x484xf32, #tpu.memory_space<vmem>>, vector<1x484xf32>
    tpu.vector_store %arg6[%c41, %c0_48], %89 {strides = array<i32>} : memref<49x484xf32, #tpu.memory_space<vmem>>, vector<1x484xf32>,
    %91 = vector.extract_strided_slice %4 {offsets = [0, 191], sizes = [1, 484], strides = [1, 1]} : vector<1x740xf32> to vector<1x484xf32>
    %c42 = arith.constant 42 : index
    %c0_49 = arith.constant 0 : index
    %92 = vector.load %arg6[%c42, %c0_49] : memref<49x484xf32, #tpu.memory_space<vmem>>, vector<1x484xf32>
    tpu.vector_store %arg6[%c42, %c0_49], %91 {strides = array<i32>} : memref<49x484xf32, #tpu.memory_space<vmem>>, vector<1x484xf32>,
    %93 = vector.extract_strided_slice %4 {offsets = [0, 192], sizes = [1, 484], strides = [1, 1]} : vector<1x740xf32> to vector<1x484xf32>
    %c43 = arith.constant 43 : index
    %c0_50 = arith.constant 0 : index
    %94 = vector.load %arg6[%c43, %c0_50] : memref<49x484xf32, #tpu.memory_space<vmem>>, vector<1x484xf32>
    tpu.vector_store %arg6[%c43, %c0_50], %93 {strides = array<i32>} : memref<49x484xf32, #tpu.memory_space<vmem>>, vector<1x484xf32>,
    %95 = vector.extract_strided_slice %4 {offsets = [0, 193], sizes = [1, 484], strides = [1, 1]} : vector<1x740xf32> to vector<1x484xf32>
    %c44 = arith.constant 44 : index
    %c0_51 = arith.constant 0 : index
    %96 = vector.load %arg6[%c44, %c0_51] : memref<49x484xf32, #tpu.memory_space<vmem>>, vector<1x484xf32>
    tpu.vector_store %arg6[%c44, %c0_51], %95 {strides = array<i32>} : memref<49x484xf32, #tpu.memory_space<vmem>>, vector<1x484xf32>,
    %97 = vector.extract_strided_slice %4 {offsets = [0, 194], sizes = [1, 484], strides = [1, 1]} : vector<1x740xf32> to vector<1x484xf32>
    %c45 = arith.constant 45 : index
    %c0_52 = arith.constant 0 : index
    %98 = vector.load %arg6[%c45, %c0_52] : memref<49x484xf32, #tpu.memory_space<vmem>>, vector<1x484xf32>
    tpu.vector_store %arg6[%c45, %c0_52], %97 {strides = array<i32>} : memref<49x484xf32, #tpu.memory_space<vmem>>, vector<1x484xf32>,
    %99 = vector.extract_strided_slice %4 {offsets = [0, 195], sizes = [1, 484], strides = [1, 1]} : vector<1x740xf32> to vector<1x484xf32>
    %c46 = arith.constant 46 : index
    %c0_53 = arith.constant 0 : index
    %100 = vector.load %arg6[%c46, %c0_53] : memref<49x484xf32, #tpu.memory_space<vmem>>, vector<1x484xf32>
    tpu.vector_store %arg6[%c46, %c0_53], %99 {strides = array<i32>} : memref<49x484xf32, #tpu.memory_space<vmem>>, vector<1x484xf32>,
    %101 = vector.extract_strided_slice %4 {offsets = [0, 196], sizes = [1, 484], strides = [1, 1]} : vector<1x740xf32> to vector<1x484xf32>
    %c47 = arith.constant 47 : index
    %c0_54 = arith.constant 0 : index
    %102 = vector.load %arg6[%c47, %c0_54] : memref<49x484xf32, #tpu.memory_space<vmem>>, vector<1x484xf32>
    tpu.vector_store %arg6[%c47, %c0_54], %101 {strides = array<i32>} : memref<49x484xf32, #tpu.memory_space<vmem>>, vector<1x484xf32>,
    %103 = vector.extract_strided_slice %4 {offsets = [0, 197], sizes = [1, 484], strides = [1, 1]} : vector<1x740xf32> to vector<1x484xf32>
    %c48 = arith.constant 48 : index
    %c0_55 = arith.constant 0 : index
    %104 = vector.load %arg6[%c48, %c0_55] : memref<49x484xf32, #tpu.memory_space<vmem>>, vector<1x484xf32>
    tpu.vector_store %arg6[%c48, %c0_55], %103 {strides = array<i32>} : memref<49x484xf32, #tpu.memory_space<vmem>>, vector<1x484xf32>,
    %c0_56 = arith.constant 0 : index
    %c0_57 = arith.constant 0 : index
    %105 = vector.load %arg3[%c0_56, %c0_57] : memref<64x49xf32, #tpu.memory_space<vmem>>, vector<64x49xf32>
    %c0_58 = arith.constant 0 : index
    %c0_59 = arith.constant 0 : index
    %106 = vector.load %arg6[%c0_58, %c0_59] : memref<49x484xf32, #tpu.memory_space<vmem>>, vector<49x484xf32>
    %cst = arith.constant dense<0.000000e+00> : vector<64x484xf32>
    %107 = tpu.matmul %105, %106, %cst {dimension_numbers = #tpu.dot_dimension_numbers<[1], [0], [0], [1], [0, 0, 1, 1], [], []>} : vector<64x49xf32>, vector<49x484xf32>, vector<64x484xf32> -> vector<64x484xf32>
    %108 = vector.broadcast %6 : vector<1x484xf32> to vector<64x484xf32>
    %109 = arith.mulf %107, %108 : vector<64x484xf32>
    %cst_60 = arith.constant dense<0.000000e+00> : vector<64xf32>
    %110 = vector.multi_reduction <add>, %109, %cst_60 [1] : vector<64x484xf32> to vector<64xf32>
    %111 = vector.shape_cast %110 : vector<64xf32> to vector<64x1xf32>
    %cst_61 = arith.constant 3.906250e-03 : f32
    %112 = vector.broadcast %cst_61 : f32 to vector<64x1xf32>
    %113 = arith.mulf %111, %112 : vector<64x1xf32>
    %114 = arith.mulf %109, %107 : vector<64x484xf32>
    %cst_62 = arith.constant dense<0.000000e+00> : vector<64xf32>
    %115 = vector.multi_reduction <add>, %114, %cst_62 [1] : vector<64x484xf32> to vector<64xf32>
    %116 = vector.shape_cast %115 : vector<64xf32> to vector<64x1xf32>
    %cst_63 = arith.constant 3.906250e-03 : f32
    %117 = vector.broadcast %cst_63 : f32 to vector<64x1xf32>
    %118 = arith.mulf %116, %117 : vector<64x1xf32>
    %119 = arith.mulf %113, %113 : vector<64x1xf32>
    %120 = arith.subf %118, %119 : vector<64x1xf32>
    %cst_64 = arith.constant 9.99999974E-6 : f32
    %121 = vector.broadcast %cst_64 : f32 to vector<64x1xf32>
    %122 = arith.addf %120, %121 : vector<64x1xf32>
    %123 = math.rsqrt %122 : vector<64x1xf32>
    %124 = vector.broadcast %113 : vector<64x1xf32> to vector<64x484xf32>
    %125 = arith.subf %107, %124 : vector<64x484xf32>
    %126 = vector.broadcast %123 : vector<64x1xf32> to vector<64x484xf32>
    %127 = arith.mulf %125, %126 : vector<64x484xf32>
    %cst_65 = arith.constant 0.000000e+00 : f32
    %128 = vector.broadcast %cst_65 : f32 to vector<64x484xf32>
    %129 = arith.maximumf %127, %128 : vector<64x484xf32>
    %130 = vector.broadcast %6 : vector<1x484xf32> to vector<64x484xf32>
    %131 = arith.mulf %129, %130 : vector<64x484xf32>
    %c0_66 = arith.constant 0 : index
    %c0_67 = arith.constant 0 : index
    %132 = vector.load %arg4[%c0_66, %c0_67] : memref<49x64xf32, #tpu.memory_space<vmem>>, vector<49x64xf32>
    %cst_68 = arith.constant dense<0.000000e+00> : vector<49x484xf32>
    %133 = tpu.matmul %132, %131, %cst_68 {dimension_numbers = #tpu.dot_dimension_numbers<[1], [0], [0], [1], [0, 0, 1, 1], [], []>} : vector<49x64xf32>, vector<64x484xf32>, vector<49x484xf32> -> vector<49x484xf32>
    %c0_69 = arith.constant 0 : index
    %c128 = arith.constant 128 : index
    %134 = vector.load %arg7[%c0_69, %c128] : memref<49x740xf32, #tpu.memory_space<vmem>>, vector<49x484xf32>
    tpu.vector_store %arg7[%c0_69, %c128], %133 {strides = array<i32>} : memref<49x740xf32, #tpu.memory_space<vmem>>, vector<49x484xf32>,
    %cst_70 = arith.constant 0.000000e+00 : f32
    %135 = vector.broadcast %cst_70 : f32 to vector<1x484xf32>
    %c0_71 = arith.constant 0 : index
    %c59 = arith.constant 59 : index
    %136 = vector.load %arg7[%c0_71, %c59] : memref<49x740xf32, #tpu.memory_space<vmem>>, vector<1x484xf32>
    %137 = arith.addf %135, %136 : vector<1x484xf32>
    %c1_72 = arith.constant 1 : index
    %c60 = arith.constant 60 : index
    %138 = vector.load %arg7[%c1_72, %c60] : memref<49x740xf32, #tpu.memory_space<vmem>>, vector<1x484xf32>
    %139 = arith.addf %137, %138 : vector<1x484xf32>
    %c2_73 = arith.constant 2 : index
    %c61 = arith.constant 61 : index
    %140 = vector.load %arg7[%c2_73, %c61] : memref<49x740xf32, #tpu.memory_space<vmem>>, vector<1x484xf32>
    %141 = arith.addf %139, %140 : vector<1x484xf32>
    %c3_74 = arith.constant 3 : index
    %c62 = arith.constant 62 : index
    %142 = vector.load %arg7[%c3_74, %c62] : memref<49x740xf32, #tpu.memory_space<vmem>>, vector<1x484xf32>
    %143 = arith.addf %141, %142 : vector<1x484xf32>
    %c4_75 = arith.constant 4 : index
    %c63 = arith.constant 63 : index
    %144 = vector.load %arg7[%c4_75, %c63] : memref<49x740xf32, #tpu.memory_space<vmem>>, vector<1x484xf32>
    %145 = arith.addf %143, %144 : vector<1x484xf32>
    %c5_76 = arith.constant 5 : index
    %c64 = arith.constant 64 : index
    %146 = vector.load %arg7[%c5_76, %c64] : memref<49x740xf32, #tpu.memory_space<vmem>>, vector<1x484xf32>
    %147 = arith.addf %145, %146 : vector<1x484xf32>
    %c6_77 = arith.constant 6 : index
    %c65 = arith.constant 65 : index
    %148 = vector.load %arg7[%c6_77, %c65] : memref<49x740xf32, #tpu.memory_space<vmem>>, vector<1x484xf32>
    %149 = arith.addf %147, %148 : vector<1x484xf32>
    %c7_78 = arith.constant 7 : index
    %c81 = arith.constant 81 : index
    %150 = vector.load %arg7[%c7_78, %c81] : memref<49x740xf32, #tpu.memory_space<vmem>>, vector<1x484xf32>
    %151 = arith.addf %149, %150 : vector<1x484xf32>
    %c8_79 = arith.constant 8 : index
    %c82 = arith.constant 82 : index
    %152 = vector.load %arg7[%c8_79, %c82] : memref<49x740xf32, #tpu.memory_space<vmem>>, vector<1x484xf32>
    %153 = arith.addf %151, %152 : vector<1x484xf32>
    %c9_80 = arith.constant 9 : index
    %c83 = arith.constant 83 : index
    %154 = vector.load %arg7[%c9_80, %c83] : memref<49x740xf32, #tpu.memory_space<vmem>>, vector<1x484xf32>
    %155 = arith.addf %153, %154 : vector<1x484xf32>
    %c10_81 = arith.constant 10 : index
    %c84 = arith.constant 84 : index
    %156 = vector.load %arg7[%c10_81, %c84] : memref<49x740xf32, #tpu.memory_space<vmem>>, vector<1x484xf32>
    %157 = arith.addf %155, %156 : vector<1x484xf32>
    %c11_82 = arith.constant 11 : index
    %c85 = arith.constant 85 : index
    %158 = vector.load %arg7[%c11_82, %c85] : memref<49x740xf32, #tpu.memory_space<vmem>>, vector<1x484xf32>
    %159 = arith.addf %157, %158 : vector<1x484xf32>
    %c12_83 = arith.constant 12 : index
    %c86 = arith.constant 86 : index
    %160 = vector.load %arg7[%c12_83, %c86] : memref<49x740xf32, #tpu.memory_space<vmem>>, vector<1x484xf32>
    %161 = arith.addf %159, %160 : vector<1x484xf32>
    %c13_84 = arith.constant 13 : index
    %c87 = arith.constant 87 : index
    %162 = vector.load %arg7[%c13_84, %c87] : memref<49x740xf32, #tpu.memory_space<vmem>>, vector<1x484xf32>
    %163 = arith.addf %161, %162 : vector<1x484xf32>
    %c14_85 = arith.constant 14 : index
    %c103 = arith.constant 103 : index
    %164 = vector.load %arg7[%c14_85, %c103] : memref<49x740xf32, #tpu.memory_space<vmem>>, vector<1x484xf32>
    %165 = arith.addf %163, %164 : vector<1x484xf32>
    %c15_86 = arith.constant 15 : index
    %c104 = arith.constant 104 : index
    %166 = vector.load %arg7[%c15_86, %c104] : memref<49x740xf32, #tpu.memory_space<vmem>>, vector<1x484xf32>
    %167 = arith.addf %165, %166 : vector<1x484xf32>
    %c16_87 = arith.constant 16 : index
    %c105 = arith.constant 105 : index
    %168 = vector.load %arg7[%c16_87, %c105] : memref<49x740xf32, #tpu.memory_space<vmem>>, vector<1x484xf32>
    %169 = arith.addf %167, %168 : vector<1x484xf32>
    %c17_88 = arith.constant 17 : index
    %c106 = arith.constant 106 : index
    %170 = vector.load %arg7[%c17_88, %c106] : memref<49x740xf32, #tpu.memory_space<vmem>>, vector<1x484xf32>
    %171 = arith.addf %169, %170 : vector<1x484xf32>
    %c18_89 = arith.constant 18 : index
    %c107 = arith.constant 107 : index
    %172 = vector.load %arg7[%c18_89, %c107] : memref<49x740xf32, #tpu.memory_space<vmem>>, vector<1x484xf32>
    %173 = arith.addf %171, %172 : vector<1x484xf32>
    %c19_90 = arith.constant 19 : index
    %c108 = arith.constant 108 : index
    %174 = vector.load %arg7[%c19_90, %c108] : memref<49x740xf32, #tpu.memory_space<vmem>>, vector<1x484xf32>
    %175 = arith.addf %173, %174 : vector<1x484xf32>
    %c20_91 = arith.constant 20 : index
    %c109 = arith.constant 109 : index
    %176 = vector.load %arg7[%c20_91, %c109] : memref<49x740xf32, #tpu.memory_space<vmem>>, vector<1x484xf32>
    %177 = arith.addf %175, %176 : vector<1x484xf32>
    %c21_92 = arith.constant 21 : index
    %c125 = arith.constant 125 : index
    %178 = vector.load %arg7[%c21_92, %c125] : memref<49x740xf32, #tpu.memory_space<vmem>>, vector<1x484xf32>
    %179 = arith.addf %177, %178 : vector<1x484xf32>
    %c22_93 = arith.constant 22 : index
    %c126 = arith.constant 126 : index
    %180 = vector.load %arg7[%c22_93, %c126] : memref<49x740xf32, #tpu.memory_space<vmem>>, vector<1x484xf32>
    %181 = arith.addf %179, %180 : vector<1x484xf32>
    %c23_94 = arith.constant 23 : index
    %c127 = arith.constant 127 : index
    %182 = vector.load %arg7[%c23_94, %c127] : memref<49x740xf32, #tpu.memory_space<vmem>>, vector<1x484xf32>
    %183 = arith.addf %181, %182 : vector<1x484xf32>
    %c24_95 = arith.constant 24 : index
    %c128_96 = arith.constant 128 : index
    %184 = vector.load %arg7[%c24_95, %c128_96] : memref<49x740xf32, #tpu.memory_space<vmem>>, vector<1x484xf32>
    %185 = arith.addf %183, %184 : vector<1x484xf32>
    %c25_97 = arith.constant 25 : index
    %c129 = arith.constant 129 : index
    %186 = vector.load %arg7[%c25_97, %c129] : memref<49x740xf32, #tpu.memory_space<vmem>>, vector<1x484xf32>
    %187 = arith.addf %185, %186 : vector<1x484xf32>
    %c26_98 = arith.constant 26 : index
    %c130 = arith.constant 130 : index
    %188 = vector.load %arg7[%c26_98, %c130] : memref<49x740xf32, #tpu.memory_space<vmem>>, vector<1x484xf32>
    %189 = arith.addf %187, %188 : vector<1x484xf32>
    %c27_99 = arith.constant 27 : index
    %c131 = arith.constant 131 : index
    %190 = vector.load %arg7[%c27_99, %c131] : memref<49x740xf32, #tpu.memory_space<vmem>>, vector<1x484xf32>
    %191 = arith.addf %189, %190 : vector<1x484xf32>
    %c28_100 = arith.constant 28 : index
    %c147 = arith.constant 147 : index
    %192 = vector.load %arg7[%c28_100, %c147] : memref<49x740xf32, #tpu.memory_space<vmem>>, vector<1x484xf32>
    %193 = arith.addf %191, %192 : vector<1x484xf32>
    %c29_101 = arith.constant 29 : index
    %c148 = arith.constant 148 : index
    %194 = vector.load %arg7[%c29_101, %c148] : memref<49x740xf32, #tpu.memory_space<vmem>>, vector<1x484xf32>
    %195 = arith.addf %193, %194 : vector<1x484xf32>
    %c30_102 = arith.constant 30 : index
    %c149 = arith.constant 149 : index
    %196 = vector.load %arg7[%c30_102, %c149] : memref<49x740xf32, #tpu.memory_space<vmem>>, vector<1x484xf32>
    %197 = arith.addf %195, %196 : vector<1x484xf32>
    %c31_103 = arith.constant 31 : index
    %c150 = arith.constant 150 : index
    %198 = vector.load %arg7[%c31_103, %c150] : memref<49x740xf32, #tpu.memory_space<vmem>>, vector<1x484xf32>
    %199 = arith.addf %197, %198 : vector<1x484xf32>
    %c32_104 = arith.constant 32 : index
    %c151 = arith.constant 151 : index
    %200 = vector.load %arg7[%c32_104, %c151] : memref<49x740xf32, #tpu.memory_space<vmem>>, vector<1x484xf32>
    %201 = arith.addf %199, %200 : vector<1x484xf32>
    %c33_105 = arith.constant 33 : index
    %c152 = arith.constant 152 : index
    %202 = vector.load %arg7[%c33_105, %c152] : memref<49x740xf32, #tpu.memory_space<vmem>>, vector<1x484xf32>
    %203 = arith.addf %201, %202 : vector<1x484xf32>
    %c34_106 = arith.constant 34 : index
    %c153 = arith.constant 153 : index
    %204 = vector.load %arg7[%c34_106, %c153] : memref<49x740xf32, #tpu.memory_space<vmem>>, vector<1x484xf32>
    %205 = arith.addf %203, %204 : vector<1x484xf32>
    %c35_107 = arith.constant 35 : index
    %c169 = arith.constant 169 : index
    %206 = vector.load %arg7[%c35_107, %c169] : memref<49x740xf32, #tpu.memory_space<vmem>>, vector<1x484xf32>
    %207 = arith.addf %205, %206 : vector<1x484xf32>
    %c36_108 = arith.constant 36 : index
    %c170 = arith.constant 170 : index
    %208 = vector.load %arg7[%c36_108, %c170] : memref<49x740xf32, #tpu.memory_space<vmem>>, vector<1x484xf32>
    %209 = arith.addf %207, %208 : vector<1x484xf32>
    %c37_109 = arith.constant 37 : index
    %c171 = arith.constant 171 : index
    %210 = vector.load %arg7[%c37_109, %c171] : memref<49x740xf32, #tpu.memory_space<vmem>>, vector<1x484xf32>
    %211 = arith.addf %209, %210 : vector<1x484xf32>
    %c38_110 = arith.constant 38 : index
    %c172 = arith.constant 172 : index
    %212 = vector.load %arg7[%c38_110, %c172] : memref<49x740xf32, #tpu.memory_space<vmem>>, vector<1x484xf32>
    %213 = arith.addf %211, %212 : vector<1x484xf32>
    %c39_111 = arith.constant 39 : index
    %c173 = arith.constant 173 : index
    %214 = vector.load %arg7[%c39_111, %c173] : memref<49x740xf32, #tpu.memory_space<vmem>>, vector<1x484xf32>
    %215 = arith.addf %213, %214 : vector<1x484xf32>
    %c40_112 = arith.constant 40 : index
    %c174 = arith.constant 174 : index
    %216 = vector.load %arg7[%c40_112, %c174] : memref<49x740xf32, #tpu.memory_space<vmem>>, vector<1x484xf32>
    %217 = arith.addf %215, %216 : vector<1x484xf32>
    %c41_113 = arith.constant 41 : index
    %c175 = arith.constant 175 : index
    %218 = vector.load %arg7[%c41_113, %c175] : memref<49x740xf32, #tpu.memory_space<vmem>>, vector<1x484xf32>
    %219 = arith.addf %217, %218 : vector<1x484xf32>
    %c42_114 = arith.constant 42 : index
    %c191 = arith.constant 191 : index
    %220 = vector.load %arg7[%c42_114, %c191] : memref<49x740xf32, #tpu.memory_space<vmem>>, vector<1x484xf32>
    %221 = arith.addf %219, %220 : vector<1x484xf32>
    %c43_115 = arith.constant 43 : index
    %c192 = arith.constant 192 : index
    %222 = vector.load %arg7[%c43_115, %c192] : memref<49x740xf32, #tpu.memory_space<vmem>>, vector<1x484xf32>
    %223 = arith.addf %221, %222 : vector<1x484xf32>
    %c44_116 = arith.constant 44 : index
    %c193 = arith.constant 193 : index
    %224 = vector.load %arg7[%c44_116, %c193] : memref<49x740xf32, #tpu.memory_space<vmem>>, vector<1x484xf32>
    %225 = arith.addf %223, %224 : vector<1x484xf32>
    %c45_117 = arith.constant 45 : index
    %c194 = arith.constant 194 : index
    %226 = vector.load %arg7[%c45_117, %c194] : memref<49x740xf32, #tpu.memory_space<vmem>>, vector<1x484xf32>
    %227 = arith.addf %225, %226 : vector<1x484xf32>
    %c46_118 = arith.constant 46 : index
    %c195 = arith.constant 195 : index
    %228 = vector.load %arg7[%c46_118, %c195] : memref<49x740xf32, #tpu.memory_space<vmem>>, vector<1x484xf32>
    %229 = arith.addf %227, %228 : vector<1x484xf32>
    %c47_119 = arith.constant 47 : index
    %c196 = arith.constant 196 : index
    %230 = vector.load %arg7[%c47_119, %c196] : memref<49x740xf32, #tpu.memory_space<vmem>>, vector<1x484xf32>
    %231 = arith.addf %229, %230 : vector<1x484xf32>
    %c48_120 = arith.constant 48 : index
    %c197 = arith.constant 197 : index
    %232 = vector.load %arg7[%c48_120, %c197] : memref<49x740xf32, #tpu.memory_space<vmem>>, vector<1x484xf32>
    %233 = arith.addf %231, %232 : vector<1x484xf32>
    %234 = math.tanh %233 : vector<1x484xf32>
    %c0_121 = arith.constant 0 : index
    %c0_122 = arith.constant 0 : index
    %c0_123 = arith.constant 0 : index
    %235 = vector.load %arg5[%c0_121, %c0_122, %c0_123] : memref<1x1x484xf32, #tpu.memory_space<vmem>>, vector<1x1x484xf32>
    %236 = vector.shape_cast %235 : vector<1x1x484xf32> to vector<1x484xf32>
    %237 = vector.shape_cast %234 : vector<1x484xf32> to vector<1x1x484xf32>
    tpu.vector_store %arg5[%c0_121, %c0_122, %c0_123], %237 {strides = array<i32>} : memref<1x1x484xf32, #tpu.memory_space<vmem>>, vector<1x1x484xf32>,
    return
  }
  func.func @transform_0(%arg0: i32) -> (i32, i32, i32) {
    %c0_i32 = arith.constant 0 : i32
    %c0_i32_0 = arith.constant 0 : i32
    %c0_i32_1 = arith.constant 0 : i32
    return %arg0, %c0_i32, %c0_i32_0 : i32, i32, i32
  }
  func.func @transform_1(%arg0: i32) -> (i32, i32, i32) {
    %c0_i32 = arith.constant 0 : i32
    %c0_i32_0 = arith.constant 0 : i32
    %c0_i32_1 = arith.constant 0 : i32
    %c0_i32_2 = arith.constant 0 : i32
    return %c0_i32, %c0_i32_0, %c0_i32_1 : i32, i32, i32
  }
  func.func @transform_2(%arg0: i32) -> (i32, i32) {
    %c0_i32 = arith.constant 0 : i32
    %c0_i32_0 = arith.constant 0 : i32
    %c0_i32_1 = arith.constant 0 : i32
    return %c0_i32, %c0_i32_0 : i32, i32
  }
  func.func @transform_3(%arg0: i32) -> (i32, i32) {
    %c0_i32 = arith.constant 0 : i32
    %c0_i32_0 = arith.constant 0 : i32
    %c0_i32_1 = arith.constant 0 : i32
    return %c0_i32, %c0_i32_0 : i32, i32
  }
  func.func @transform_4(%arg0: i32) -> (i32, i32, i32) {
    %c0_i32 = arith.constant 0 : i32
    %c0_i32_0 = arith.constant 0 : i32
    %c0_i32_1 = arith.constant 0 : i32
    return %arg0, %c0_i32, %c0_i32_0 : i32, i32, i32
  }
}

</mosaic_0001>

<llo_original>
// kernel: generator_forward.1
$region0: #{generator_forward.1}
  #allocation0 [shape = 'u32[]', space=smem, size = 0x4, offset = 0x4, fixed_abs, tag = 'smem constant byte address 0x4 - core index']
  #allocation1 [shape = 'u32[144,128]{1,0:T(1,128)}', space=vmem, size = 0x12000, scoped, tag = 'internal scratch']
  #allocation2 [shape = 'f32[49,484]{1,0:T(8,128)}', space=vmem, size = 0x1c000, scoped, tag = 'scratch operand']
  #allocation3 [shape = 'f32[49,740]{1,0:T(8,128)}', space=vmem, size = 0x2a000, scoped, tag = 'scratch operand']
  %s0 = inlined_call_operand.vmem [shape: f32[2,1,740], index: 0, kind: input, shape index: {}]
  %s1 = inlined_call_operand.vmem [shape: f32[1,1,484], index: 1, kind: input, shape index: {}]
  %s2 = inlined_call_operand.vmem [shape: f32[64,49], index: 2, kind: input, shape index: {}]
  %s3 = inlined_call_operand.vmem [shape: f32[49,64], index: 3, kind: input, shape index: {}]
  %s4 = inlined_call_operand.vmem [shape: f32[2,1,484], index: 4, kind: output, shape index: {}]
  %s5 = sld [smem:[#allocation0]]
  $region53: #{generator_forward.1} parent=0
    _
  %s7 = ssub.s32 1, %s5
  %s8 = scalar_select 0, %s7, %s5
  loop: start=0, step=1, limit=4
  $region2: #{generator_forward.1} parent=0 // loop_pre_header
    _
  $region3: #{generator_forward.1} parent=0 // loop_header
    %s10 = sphi 0, %s14
    %p11 = scmp.ge.s32.totalorder %s10, 4
    %s20 = sphi 0, %s22
    %s23 = sphi 0, %s20
    %s24 = sphi 0, %s23
    %s40 = sphi 0, %s24
    %s44 = sphi 0, %s44
    %s46 = sphi 0, %s44
    %s47 = sphi 0, %s46
    %s61 = sphi 0, %s47
    %s65 = sphi 0, %s65
    %s67 = sphi 0, %s65
    %s68 = sphi 0, %s67
    %s82 = sphi 0, %s68
    %s86 = sphi 0, %s86
    %s88 = sphi 0, %s86
    %s89 = sphi 0, %s88
    %s103 = sphi 0, %s89
    %s109 = sphi 0, %s111
    %s112 = sphi 0, %s109
    %s113 = sphi 0, %s112
    %s129 = sphi 0, %s113
  $region4: #{generator_forward.1} parent=0 // loop_header_branch
    %13 = sbr.rel (%p11) target = $region8
  $region5: #{generator_forward.1} parent=0 // loop_body
    %s15 = ssub.s32 %s10, 1
    %s16 = ssub.s32 %s10, 2
    %s17 = sadd.s32 %s10, 1
    %s18 = ssub.s32 %s10, %s17
    %p19 = scmp.eq.s32.totalorder %s18, 0
    %s21 = sadd.s32 %s20, 1
    %s22 = scalar_select %p19, %s20, %s21
    %p25 = pneg %p19
    %p26 = scmp.eq.s32.totalorder %s10, 1
    %p27 = por %p25, %p26
    %p28 = scmp.ne.s32.totalorder %s20, %s23
    %p29 = scmp.eq.s32.totalorder %s10, 0
    %p30 = por %p28, %p29
    %p31 = scmp.ne.s32.totalorder %s20, %s23
    %p32 = scmp.eq.s32.totalorder %s15, 1
    %p33 = por %p31, %p32
    %p34 = scmp.ne.s32.totalorder %s23, %s24
    %p35 = scmp.eq.s32.totalorder %s15, 0
    %p36 = por %p34, %p35
    %p37 = scmp.ne.s32.totalorder %s23, %s24
    %p38 = scmp.eq.s32.totalorder %s16, 1
    %p39 = por %p37, %p38
    %p41 = scmp.ne.s32.totalorder %s24, %s40
    %p42 = scmp.eq.s32.totalorder %s16, 0
    %p43 = por %p41, %p42
    %s45 = sadd.s32 %s44, 1
    %p48 = scmp.eq.s32.totalorder %s10, 1
    %p49 = scmp.ne.s32.totalorder %s44, %s46
    %p50 = scmp.eq.s32.totalorder %s10, 0
    %p51 = por %p49, %p50
    %p52 = scmp.ne.s32.totalorder %s44, %s46
    %p53 = scmp.eq.s32.totalorder %s15, 1
    %p54 = por %p52, %p53
    %p55 = scmp.ne.s32.totalorder %s46, %s47
    %p56 = scmp.eq.s32.totalorder %s15, 0
    %p57 = por %p55, %p56
    %p58 = scmp.ne.s32.totalorder %s46, %s47
    %p59 = scmp.eq.s32.totalorder %s16, 1
    %p60 = por %p58, %p59
    %p62 = scmp.ne.s32.totalorder %s47, %s61
    %p63 = scmp.eq.s32.totalorder %s16, 0
    %p64 = por %p62, %p63
    %s66 = sadd.s32 %s65, 1
    %p69 = scmp.eq.s32.totalorder %s10, 1
    %p70 = scmp.ne.s32.totalorder %s65, %s67
    %p71 = scmp.eq.s32.totalorder %s10, 0
    %p72 = por %p70, %p71
    %p73 = scmp.ne.s32.totalorder %s65, %s67
    %p74 = scmp.eq.s32.totalorder %s15, 1
    %p75 = por %p73, %p74
    %p76 = scmp.ne.s32.totalorder %s67, %s68
    %p77 = scmp.eq.s32.totalorder %s15, 0
    %p78 = por %p76, %p77
    %p79 = scmp.ne.s32.totalorder %s67, %s68
    %p80 = scmp.eq.s32.totalorder %s16, 1
    %p81 = por %p79, %p80
    %p83 = scmp.ne.s32.totalorder %s68, %s82
    %p84 = scmp.eq.s32.totalorder %s16, 0
    %p85 = por %p83, %p84
    %s87 = sadd.s32 %s86, 1
    %p90 = scmp.eq.s32.totalorder %s10, 1
    %p91 = scmp.ne.s32.totalorder %s86, %s88
    %p92 = scmp.eq.s32.totalorder %s10, 0
    %p93 = por %p91, %p92
    %p94 = scmp.ne.s32.totalorder %s86, %s88
    %p95 = scmp.eq.s32.totalorder %s15, 1
    %p96 = por %p94, %p95
    %p97 = scmp.ne.s32.totalorder %s88, %s89
    %p98 = scmp.eq.s32.totalorder %s15, 0
    %p99 = por %p97, %p98
    %p100 = scmp.ne.s32.totalorder %s88, %s89
    %p101 = scmp.eq.s32.totalorder %s16, 1
    %p102 = por %p100, %p101
    %p104 = scmp.ne.s32.totalorder %s89, %s103
    %p105 = scmp.eq.s32.totalorder %s16, 0
    %p106 = por %p104, %p105
    %s107 = ssub.s32 %s10, %s17
    %p108 = scmp.eq.s32.totalorder %s107, 0
    %s110 = sadd.s32 %s109, 1
    %s111 = scalar_select %p108, %s109, %s110
    %p114 = pneg %p108
    %p115 = scmp.eq.s32.totalorder %s10, 1
    %p116 = por %p114, %p115
    %p117 = scmp.ne.s32.totalorder %s109, %s112
    %p118 = scmp.eq.s32.totalorder %s10, 0
    %p119 = por %p117, %p118
    %p120 = scmp.ne.s32.totalorder %s109, %s112
    %p121 = scmp.eq.s32.totalorder %s15, 1
    %p122 = por %p120, %p121
    %p123 = scmp.ne.s32.totalorder %s112, %s113
    %p124 = scmp.eq.s32.totalorder %s15, 0
    %p125 = por %p123, %p124
    %p126 = scmp.ne.s32.totalorder %s112, %s113
    %p127 = scmp.eq.s32.totalorder %s16, 1
    %p128 = por %p126, %p127
    %p130 = scmp.ne.s32.totalorder %s113, %s129
    %p131 = scmp.eq.s32.totalorder %s16, 0
    %p132 = por %p130, %p131
    %p133 = scmp.le.s32.totalorder 1, %s10
    %p134 = scmp.lt.s32.totalorder %s10, 3
    %p135 = pnand %p133, %p134
    %p136 = pneg %p135
    // Predicated region
    $region9: #{generator_forward.1} parent=5 // pred_check
      _
    $region10: #{generator_forward.1} parent=5 // pred_check_branch
      %138 = sbr.rel (%p135) target = $region12
    $region11: #{generator_forward.1} parent=5 // pred_region
      %s139 = ssub.s32 %s10, 1
      // Predicated region
      $region13: #{generator_forward.1} parent=11 // pred_check
        %p140 = pneg %p57
      $region14: #{generator_forward.1} parent=11 // pred_check_branch
        %142 = sbr.rel (%p140) target = $region16
      $region15: #{generator_forward.1} parent=11 // pred_region
        _
      $region16: #{generator_forward.1} parent=11 // pred_fallthru
        _
      // Predicated region
      $region17: #{generator_forward.1} parent=11 // pred_check
        %p143 = pneg %p78
      $region18: #{generator_forward.1} parent=11 // pred_check_branch
        %145 = sbr.rel (%p143) target = $region20
      $region19: #{generator_forward.1} parent=11 // pred_region
        _
      $region20: #{generator_forward.1} parent=11 // pred_fallthru
        _
      // Predicated region
      $region21: #{generator_forward.1} parent=11 // pred_check
        %p146 = pneg %p99
      $region22: #{generator_forward.1} parent=11 // pred_check_branch
        %148 = sbr.rel (%p146) target = $region24
      $region23: #{generator_forward.1} parent=11 // pred_region
        _
      $region24: #{generator_forward.1} parent=11 // pred_fallthru
        _
    $region12: #{generator_forward.1} parent=5 // pred_fallthru
      _
    %p149 = scmp.lt.s32.totalorder %s10, 2
    // Predicated region
    $region25: #{generator_forward.1} parent=5 // pred_check
      %p150 = pneg %p149
    $region26: #{generator_forward.1} parent=5 // pred_check_branch
      %152 = sbr.rel (%p150) target = $region28
    $region27: #{generator_forward.1} parent=5 // pred_region
      // Predicated region
      $region29: #{generator_forward.1} parent=27 // pred_check
        %p153 = pneg %p30
      $region30: #{generator_forward.1} parent=27 // pred_check_branch
        %155 = sbr.rel (%p153) target = $region32
      $region31: #{generator_forward.1} parent=27 // pred_region
        %p156 = scmp.lt.s32.totalorder %s10, 1
        %s157 = scalar_select %p156, %s10, 1
        %s158 = smul.addr %s157, 6
        %s159 = scalar_lea.vmem %s0, %s158
      $region32: #{generator_forward.1} parent=27 // pred_fallthru
        _
    $region28: #{generator_forward.1} parent=5 // pred_fallthru
      _
    %p160 = scmp.le.s32.totalorder 1, %s10
    %p161 = scmp.lt.s32.totalorder %s10, 3
    %p162 = pnand %p160, %p161
    %p163 = pneg %p162
    // Predicated region
    $region33: #{generator_forward.1} parent=5 // pred_check
      _
    $region34: #{generator_forward.1} parent=5 // pred_check_branch
      %165 = sbr.rel (%p162) target = $region36
    $region35: #{generator_forward.1} parent=5 // pred_region
      %s166 = ssub.s32 %s10, 1
      %p167 = scmp.lt.s32.totalorder %s15, 1
      %s168 = scalar_select %p167, %s15, 1
      %s169 = smul.addr %s168, 6
      %s170 = scalar_lea.vmem %s0, %s169
      %p171 = pneg %p36
      %p172 = pneg %p33
      %p173 = pneg %p57
      %p174 = pneg %p54
      %p175 = pneg %p78
      %p176 = pneg %p75
      %p177 = pneg %p99
      %p178 = pneg %p96
      %p179 = pneg %p125
      %p180 = pneg %p122
      %p181 = scmp.lt.s32.totalorder %s15, 1
      %s182 = scalar_select %p181, %s15, 1
      %s183 = smul.addr %s182, 4
      %s184 = scalar_lea.vmem %s4, %s183
      %p185 = scmp.lt.s32.totalorder %s15, 1
      %s186 = scalar_select %p185, %s15, 1
      %s187 = smul.addr %s186, 6
      %s188 = scalar_lea.vmem %s0, %s187
      %p189 = scmp.lt.s32.totalorder %s15, 1
      %s190 = scalar_select %p189, %s15, 1
      %s191 = smul.addr %s190, 4
      %s192 = scalar_lea.vmem %s4, %s191
      %p193 = scmp.eq.s32.totalorder %s15, 0
      // Predicated region
      $region37: #{generator_forward.1} parent=35 // pred_check
        %p194 = pneg %p193
      $region38: #{generator_forward.1} parent=35 // pred_check_branch
        %196 = sbr.rel (%p194) target = $region40
      $region39: #{generator_forward.1} parent=35 // pred_region
        %197 = vst [vmem:[#allocation3] sm:$0xff] 0.0
        %198 = vst [vmem:[#allocation3 + $0x8] sm:$0xff] 0.0
        %199 = vst [vmem:[#allocation3 + $0x10] sm:$0xff] 0.0
        %200 = vst [vmem:[#allocation3 + $0x18] sm:$0xff] 0.0
        %201 = vst [vmem:[#allocation3 + $0x20] sm:$0xff] 0.0
        %vm202 = vcmask 818176
        %203 = vst.msk [vmem:[#allocation3 + $0x28] sm:$0xff] %vm202, 0.0
        %204 = vst [vmem:[#allocation3 + $0x30] sm:$0xff] 0.0
        %205 = vst [vmem:[#allocation3 + $0x38] sm:$0xff] 0.0
        %206 = vst [vmem:[#allocation3 + $0x40] sm:$0xff] 0.0
        %207 = vst [vmem:[#allocation3 + $0x48] sm:$0xff] 0.0
        %208 = vst [vmem:[#allocation3 + $0x50] sm:$0xff] 0.0
        %209 = vst.msk [vmem:[#allocation3 + $0x58] sm:$0xff] %vm202, 0.0
        %210 = vst [vmem:[#allocation3 + $0x60] sm:$0xff] 0.0
        %211 = vst [vmem:[#allocation3 + $0x68] sm:$0xff] 0.0
        %212 = vst [vmem:[#allocation3 + $0x70] sm:$0xff] 0.0
        %213 = vst [vmem:[#allocation3 + $0x78] sm:$0xff] 0.0
        %214 = vst [vmem:[#allocation3 + $0x80] sm:$0xff] 0.0
        %215 = vst.msk [vmem:[#allocation3 + $0x88] sm:$0xff] %vm202, 0.0
        %216 = vst [vmem:[#allocation3 + $0x90] sm:$0xff] 0.0
        %217 = vst [vmem:[#allocation3 + $0x98] sm:$0xff] 0.0
        %218 = vst [vmem:[#allocation3 + $0xa0] sm:$0xff] 0.0
        %219 = vst [vmem:[#allocation3 + $0xa8] sm:$0xff] 0.0
        %220 = vst [vmem:[#allocation3 + $0xb0] sm:$0xff] 0.0
        %221 = vst.msk [vmem:[#allocation3 + $0xb8] sm:$0xff] %vm202, 0.0
        %222 = vst [vmem:[#allocation3 + $0xc0] sm:$0xff] 0.0
        %223 = vst [vmem:[#allocation3 + $0xc8] sm:$0xff] 0.0
        %224 = vst [vmem:[#allocation3 + $0xd0] sm:$0xff] 0.0
        %225 = vst [vmem:[#allocation3 + $0xd8] sm:$0xff] 0.0
        %226 = vst [vmem:[#allocation3 + $0xe0] sm:$0xff] 0.0
        %227 = vst.msk [vmem:[#allocation3 + $0xe8] sm:$0xff] %vm202, 0.0
        %228 = vst [vmem:[#allocation3 + $0xf0] sm:$0xff] 0.0
        %229 = vst [vmem:[#allocation3 + $0xf8] sm:$0xff] 0.0
        %230 = vst [vmem:[#allocation3 + $0x100] sm:$0xff] 0.0
        %231 = vst [vmem:[#allocation3 + $0x108] sm:$0xff] 0.0
        %232 = vst [vmem:[#allocation3 + $0x110] sm:$0xff] 0.0
        %233 = vst.msk [vmem:[#allocation3 + $0x118] sm:$0xff] %vm202, 0.0
        %234 = vst [vmem:[#allocation3 + $0x120] sm:$0x1] 0.0
        %235 = vst [vmem:[#allocation3 + $0x128] sm:$0x1] 0.0
        %236 = vst [vmem:[#allocation3 + $0x130] sm:$0x1] 0.0
        %237 = vst [vmem:[#allocation3 + $0x138] sm:$0x1] 0.0
        %238 = vst [vmem:[#allocation3 + $0x140] sm:$0x1] 0.0
        %vm239 = vcmask 811008
        %240 = vst.msk [vmem:[#allocation3 + $0x148] sm:$0x1] %vm239, 0.0
      $region40: #{generator_forward.1} parent=35 // pred_fallthru
        _
      %v241 = vld [vmem:[%s188] sm:$0x3f]
      %v242 = vld [vmem:[%s1] sm:$0xf]
      %244 = vrot.lane.b32.xlu0 %v241, 69
      %v245 = vpop.permute.xlu0 %244
      %v246 = vrot.slane %v245, 1
      %vm247 = vcmask 564224
      %v248 = vsel %vm247, %v245, %v246
      %v250 = vlaneseq
      %vm251 = vcmp.ge.s32.totalorder %v250, 0
      %vm252 = vcmp.lt.s32.totalorder %v250, 484
      %vm253 = vmand %vm251, %vm252
      %254 = vst.msk [vmem:[#allocation2] ss:$8 sm:$0xf] %vm253, %v248
      %255 = vst.msk [vmem:[#allocation2] ss:$8 sm:$0x0] %vm253, %v248
      %256 = vrot.lane.b32.xlu0 %v241, 68
      %v257 = vpop.permute.xlu0 %256
      %v258 = vrot.slane %v257, 1
      %vm259 = vcmask 556032
      %v260 = vsel %vm259, %v257, %v258
      %s262 = scalar_lea.vmem [#allocation2], 1
      %263 = vst.msk [vmem:[%s262] ss:$8 sm:$0xf] %vm253, %v260
      %264 = vst.msk [vmem:[%s262] ss:$8 sm:$0x0] %vm253, %v260
      %265 = vrot.lane.b32.xlu0 %v241, 67
      %v266 = vpop.permute.xlu0 %265
      %v267 = vrot.slane %v266, 1
      %vm268 = vcmask 547840
      %v269 = vsel %vm268, %v266, %v267
      %s271 = scalar_lea.vmem [#allocation2], 2
      %272 = vst.msk [vmem:[%s271] ss:$8 sm:$0xf] %vm253, %v269
      %273 = vst.msk [vmem:[%s271] ss:$8 sm:$0x0] %vm253, %v269
      %274 = vrot.lane.b32.xlu0 %v241, 66
      %v275 = vpop.permute.xlu0 %274
      %v276 = vrot.slane %v275, 1
      %vm277 = vcmask 539648
      %v278 = vsel %vm277, %v275, %v276
      %s280 = scalar_lea.vmem [#allocation2], 3
      %281 = vst.msk [vmem:[%s280] ss:$8 sm:$0xf] %vm253, %v278
      %282 = vst.msk [vmem:[%s280] ss:$8 sm:$0x0] %vm253, %v278
      %283 = vrot.lane.b32.xlu0 %v241, 65
      %v284 = vpop.permute.xlu0 %283
      %v285 = vrot.slane %v284, 1
      %vm286 = vcmask 531456
      %v287 = vsel %vm286, %v284, %v285
      %s289 = scalar_lea.vmem [#allocation2], 4
      %290 = vst.msk [vmem:[%s289] ss:$8 sm:$0xf] %vm253, %v287
      %291 = vst.msk [vmem:[%s289] ss:$8 sm:$0x0] %vm253, %v287
      %292 = vrot.lane.b32.xlu0 %v241, 64
      %v293 = vpop.permute.xlu0 %292
      %v294 = vrot.slane %v293, 1
      %vm295 = vcmask 523264
      %v296 = vsel %vm295, %v293, %v294
      %s298 = scalar_lea.vmem [#allocation2], 5
      %299 = vst.msk [vmem:[%s298] ss:$8 sm:$0xf] %vm253, %v296
      %300 = vst.msk [vmem:[%s298] ss:$8 sm:$0x0] %vm253, %v296
      %301 = vrot.lane.b32.xlu0 %v241, 63
      %v302 = vpop.permute.xlu0 %301
      %v303 = vrot.slane %v302, 1
      %vm304 = vcmask 515072
      %v305 = vsel %vm304, %v302, %v303
      %s307 = scalar_lea.vmem [#allocation2], 6
      %308 = vst.msk [vmem:[%s307] ss:$8 sm:$0xf] %vm253, %v305
      %309 = vst.msk [vmem:[%s307] ss:$8 sm:$0x0] %vm253, %v305
      %310 = vrot.lane.b32.xlu0 %v241, 47
      %v311 = vpop.permute.xlu0 %310
      %v312 = vrot.slane %v311, 1
      %vm313 = vcmask 384000
      %v314 = vsel %vm313, %v311, %v312
      %s316 = scalar_lea.vmem [#allocation2], 7
      %317 = vst.msk [vmem:[%s316] ss:$8 sm:$0xf] %vm253, %v314
      %318 = vst.msk [vmem:[%s316] ss:$8 sm:$0x0] %vm253, %v314
      %319 = vrot.lane.b32.xlu0 %v241, 46
      %v320 = vpop.permute.xlu0 %319
      %v321 = vrot.slane %v320, 1
      %vm322 = vcmask 375808
      %v323 = vsel %vm322, %v320, %v321
      %s325 = scalar_lea.vmem [#allocation2], 32
      %326 = vst.msk [vmem:[%s325] ss:$8 sm:$0xf] %vm253, %v323
      %327 = vst.msk [vmem:[%s325] ss:$8 sm:$0x0] %vm253, %v323
      %328 = vrot.lane.b32.xlu0 %v241, 45
      %v329 = vpop.permute.xlu0 %328
      %v330 = vrot.slane %v329, 1
      %vm331 = vcmask 367616
      %v332 = vsel %vm331, %v329, %v330
      %s334 = scalar_lea.vmem [#allocation2], 33
      %335 = vst.msk [vmem:[%s334] ss:$8 sm:$0xf] %vm253, %v332
      %336 = vst.msk [vmem:[%s334] ss:$8 sm:$0x0] %vm253, %v332
      %337 = vrot.lane.b32.xlu0 %v241, 44
      %v338 = vpop.permute.xlu0 %337
      %v339 = vrot.slane %v338, 1
      %vm340 = vcmask 359424
      %v341 = vsel %vm340, %v338, %v339
      %s343 = scalar_lea.vmem [#allocation2], 34
      %344 = vst.msk [vmem:[%s343] ss:$8 sm:$0xf] %vm253, %v341
      %345 = vst.msk [vmem:[%s343] ss:$8 sm:$0x0] %vm253, %v341
      %346 = vrot.lane.b32.xlu0 %v241, 43
      %v347 = vpop.permute.xlu0 %346
      %v348 = vrot.slane %v347, 1
      %vm349 = vcmask 351232
      %v350 = vsel %vm349, %v347, %v348
      %s352 = scalar_lea.vmem [#allocation2], 35
      %353 = vst.msk [vmem:[%s352] ss:$8 sm:$0xf] %vm253, %v350
      %354 = vst.msk [vmem:[%s352] ss:$8 sm:$0x0] %vm253, %v350
      %355 = vrot.lane.b32.xlu0 %v241, 42
      %v356 = vpop.permute.xlu0 %355
      %v357 = vrot.slane %v356, 1
      %vm358 = vcmask 343040
      %v359 = vsel %vm358, %v356, %v357
      %s361 = scalar_lea.vmem [#allocation2], 36
      %362 = vst.msk [vmem:[%s361] ss:$8 sm:$0xf] %vm253, %v359
      %363 = vst.msk [vmem:[%s361] ss:$8 sm:$0x0] %vm253, %v359
      %364 = vrot.lane.b32.xlu0 %v241, 41
      %v365 = vpop.permute.xlu0 %364
      %v366 = vrot.slane %v365, 1
      %vm367 = vcmask 334848
      %v368 = vsel %vm367, %v365, %v366
      %s370 = scalar_lea.vmem [#allocation2], 37
      %371 = vst.msk [vmem:[%s370] ss:$8 sm:$0xf] %vm253, %v368
      %372 = vst.msk [vmem:[%s370] ss:$8 sm:$0x0] %vm253, %v368
      %373 = vrot.lane.b32.xlu0 %v241, 25
      %v374 = vpop.permute.xlu0 %373
      %v375 = vrot.slane %v374, 1
      %vm376 = vcmask 203776
      %v377 = vsel %vm376, %v374, %v375
      %s379 = scalar_lea.vmem [#allocation2], 38
      %380 = vst.msk [vmem:[%s379] ss:$8 sm:$0xf] %vm253, %v377
      %381 = vst.msk [vmem:[%s379] ss:$8 sm:$0x0] %vm253, %v377
      %382 = vrot.lane.b32.xlu0 %v241, 24
      %v383 = vpop.permute.xlu0 %382
      %v384 = vrot.slane %v383, 1
      %vm385 = vcmask 195584
      %v386 = vsel %vm385, %v383, %v384
      %s388 = scalar_lea.vmem [#allocation2], 39
      %389 = vst.msk [vmem:[%s388] ss:$8 sm:$0xf] %vm253, %v386
      %390 = vst.msk [vmem:[%s388] ss:$8 sm:$0x0] %vm253, %v386
      %391 = vrot.lane.b32.xlu0 %v241, 23
      %v392 = vpop.permute.xlu0 %391
      %v393 = vrot.slane %v392, 1
      %vm394 = vcmask 187392
      %v395 = vsel %vm394, %v392, %v393
      %s397 = scalar_lea.vmem [#allocation2], 64
      %398 = vst.msk [vmem:[%s397] ss:$8 sm:$0xf] %vm253, %v395
      %399 = vst.msk [vmem:[%s397] ss:$8 sm:$0x0] %vm253, %v395
      %400 = vrot.lane.b32.xlu0 %v241, 22
      %v401 = vpop.permute.xlu0 %400
      %v402 = vrot.slane %v401, 1
      %vm403 = vcmask 179200
      %v404 = vsel %vm403, %v401, %v402
      %s406 = scalar_lea.vmem [#allocation2], 65
      %407 = vst.msk [vmem:[%s406] ss:$8 sm:$0xf] %vm253, %v404
      %408 = vst.msk [vmem:[%s406] ss:$8 sm:$0x0] %vm253, %v404
      %409 = vrot.lane.b32.xlu0 %v241, 21
      %v410 = vpop.permute.xlu0 %409
      %v411 = vrot.slane %v410, 1
      %vm412 = vcmask 171008
      %v413 = vsel %vm412, %v410, %v411
      %s415 = scalar_lea.vmem [#allocation2], 66
      %416 = vst.msk [vmem:[%s415] ss:$8 sm:$0xf] %vm253, %v413
      %417 = vst.msk [vmem:[%s415] ss:$8 sm:$0x0] %vm253, %v413
      %418 = vrot.lane.b32.xlu0 %v241, 20
      %v419 = vpop.permute.xlu0 %418
      %v420 = vrot.slane %v419, 1
      %vm421 = vcmask 162816
      %v422 = vsel %vm421, %v419, %v420
      %s424 = scalar_lea.vmem [#allocation2], 67
      %425 = vst.msk [vmem:[%s424] ss:$8 sm:$0xf] %vm253, %v422
      %426 = vst.msk [vmem:[%s424] ss:$8 sm:$0x0] %vm253, %v422
      %427 = vrot.lane.b32.xlu0 %v241, 19
      %v428 = vpop.permute.xlu0 %427
      %v429 = vrot.slane %v428, 1
      %vm430 = vcmask 154624
      %v431 = vsel %vm430, %v428, %v429
      %s433 = scalar_lea.vmem [#allocation2], 68
      %434 = vst.msk [vmem:[%s433] ss:$8 sm:$0xf] %vm253, %v431
      %435 = vst.msk [vmem:[%s433] ss:$8 sm:$0x0] %vm253, %v431
      %436 = vrot.lane.b32.xlu0 %v241, 3
      %v437 = vpop.permute.xlu0 %436
      %v438 = vrot.slane %v437, 1
      %vm439 = vcmask 23552
      %v440 = vsel %vm439, %v437, %v438
      %s442 = scalar_lea.vmem [#allocation2], 69
      %443 = vst.msk [vmem:[%s442] ss:$8 sm:$0xf] %vm253, %v440
      %444 = vst.msk [vmem:[%s442] ss:$8 sm:$0x0] %vm253, %v440
      %445 = vrot.lane.b32.xlu0 %v241, 2
      %v446 = vpop.permute.xlu0 %445
      %v447 = vrot.slane %v446, 1
      %vm448 = vcmask 15360
      %v449 = vsel %vm448, %v446, %v447
      %s451 = scalar_lea.vmem [#allocation2], 70
      %452 = vst.msk [vmem:[%s451] ss:$8 sm:$0xf] %vm253, %v449
      %453 = vst.msk [vmem:[%s451] ss:$8 sm:$0x0] %vm253, %v449
      %454 = vrot.lane.b32.xlu0 %v241, 1
      %v455 = vpop.permute.xlu0 %454
      %v456 = vrot.slane %v455, 1
      %vm457 = vcmask 7168
      %v458 = vsel %vm457, %v455, %v456
      %s460 = scalar_lea.vmem [#allocation2], 71
      %461 = vst.msk [vmem:[%s460] ss:$8 sm:$0xf] %vm253, %v458
      %462 = vst.msk [vmem:[%s460] ss:$8 sm:$0x0] %vm253, %v458
      %v463 = vrot.slane %v241, 1
      %s465 = scalar_lea.vmem [#allocation2], 96
      %466 = vst.msk [vmem:[%s465] ss:$8 sm:$0xf] %vm253, %v463
      %467 = vst.msk [vmem:[%s465] ss:$8 sm:$0x0] %vm253, %v463
      %468 = vrot.lane.b32.xlu0 %v241, 127
      %v469 = vpop.permute.xlu0 %468
      %v470 = vrot.slane %v469, 1
      %v471 = vrot.slane %v469, 2
      %vm472 = vcmask 1039360
      %v473 = vsel %vm472, %v470, %v471
      %s475 = scalar_lea.vmem [#allocation2], 97
      %476 = vst.msk [vmem:[%s475] ss:$8 sm:$0xf] %vm253, %v473
      %477 = vst.msk [vmem:[%s475] ss:$8 sm:$0x0] %vm253, %v473
      %478 = vrot.lane.b32.xlu0 %v241, 126
      %v479 = vpop.permute.xlu0 %478
      %v480 = vrot.slane %v479, 1
      %v481 = vrot.slane %v479, 2
      %vm482 = vcmask 1031168
      %v483 = vsel %vm482, %v480, %v481
      %s485 = scalar_lea.vmem [#allocation2], 98
      %486 = vst.msk [vmem:[%s485] ss:$8 sm:$0xf] %vm253, %v483
      %487 = vst.msk [vmem:[%s485] ss:$8 sm:$0x0] %vm253, %v483
      %488 = vrot.lane.b32.xlu0 %v241, 125
      %v489 = vpop.permute.xlu0 %488
      %v490 = vrot.slane %v489, 1
      %v491 = vrot.slane %v489, 2
      %vm492 = vcmask 1022976
      %v493 = vsel %vm492, %v490, %v491
      %s495 = scalar_lea.vmem [#allocation2], 99
      %496 = vst.msk [vmem:[%s495] ss:$8 sm:$0xf] %vm253, %v493
      %497 = vst.msk [vmem:[%s495] ss:$8 sm:$0x0] %vm253, %v493
      %498 = vrot.lane.b32.xlu0 %v241, 109
      %v499 = vpop.permute.xlu0 %498
      %v500 = vrot.slane %v499, 1
      %v501 = vrot.slane %v499, 2
      %vm502 = vcmask 891904
      %v503 = vsel %vm502, %v500, %v501
      %s505 = scalar_lea.vmem [#allocation2], 100
      %506 = vst.msk [vmem:[%s505] ss:$8 sm:$0xf] %vm253, %v503
      %507 = vst.msk [vmem:[%s505] ss:$8 sm:$0x0] %vm253, %v503
      %508 = vrot.lane.b32.xlu0 %v241, 108
      %v509 = vpop.permute.xlu0 %508
      %v510 = vrot.slane %v509, 1
      %v511 = vrot.slane %v509, 2
      %vm512 = vcmask 883712
      %v513 = vsel %vm512, %v510, %v511
      %s515 = scalar_lea.vmem [#allocation2], 101
      %516 = vst.msk [vmem:[%s515] ss:$8 sm:$0xf] %vm253, %v513
      %517 = vst.msk [vmem:[%s515] ss:$8 sm:$0x0] %vm253, %v513
      %518 = vrot.lane.b32.xlu0 %v241, 107
      %v519 = vpop.permute.xlu0 %518
      %v520 = vrot.slane %v519, 1
      %v521 = vrot.slane %v519, 2
      %vm522 = vcmask 875520
      %v523 = vsel %vm522, %v520, %v521
      %s525 = scalar_lea.vmem [#allocation2], 102
      %526 = vst.msk [vmem:[%s525] ss:$8 sm:$0xf] %vm253, %v523
      %527 = vst.msk [vmem:[%s525] ss:$8 sm:$0x0] %vm253, %v523
      %528 = vrot.lane.b32.xlu0 %v241, 106
      %v529 = vpop.permute.xlu0 %528
      %v530 = vrot.slane %v529, 1
      %v531 = vrot.slane %v529, 2
      %vm532 = vcmask 867328
      %v533 = vsel %vm532, %v530, %v531
      %s535 = scalar_lea.vmem [#allocation2], 103
      %536 = vst.msk [vmem:[%s535] ss:$8 sm:$0xf] %vm253, %v533
      %537 = vst.msk [vmem:[%s535] ss:$8 sm:$0x0] %vm253, %v533
      %538 = vrot.lane.b32.xlu0 %v241, 105
      %v539 = vpop.permute.xlu0 %538
      %v540 = vrot.slane %v539, 1
      %v541 = vrot.slane %v539, 2
      %vm542 = vcmask 859136
      %v543 = vsel %vm542, %v540, %v541
      %s545 = scalar_lea.vmem [#allocation2], 128
      %546 = vst.msk [vmem:[%s545] ss:$8 sm:$0xf] %vm253, %v543
      %547 = vst.msk [vmem:[%s545] ss:$8 sm:$0x0] %vm253, %v543
      %548 = vrot.lane.b32.xlu0 %v241, 104
      %v549 = vpop.permute.xlu0 %548
      %v550 = vrot.slane %v549, 1
      %v551 = vrot.slane %v549, 2
      %vm552 = vcmask 850944
      %v553 = vsel %vm552, %v550, %v551
      %s555 = scalar_lea.vmem [#allocation2], 129
      %556 = vst.msk [vmem:[%s555] ss:$8 sm:$0xf] %vm253, %v553
      %557 = vst.msk [vmem:[%s555] ss:$8 sm:$0x0] %vm253, %v553
      %558 = vrot.lane.b32.xlu0 %v241, 103
      %v559 = vpop.permute.xlu0 %558
      %v560 = vrot.slane %v559, 1
      %v561 = vrot.slane %v559, 2
      %vm562 = vcmask 842752
      %v563 = vsel %vm562, %v560, %v561
      %s565 = scalar_lea.vmem [#allocation2], 130
      %566 = vst.msk [vmem:[%s565] ss:$8 sm:$0xf] %vm253, %v563
      %567 = vst.msk [vmem:[%s565] ss:$8 sm:$0x0] %vm253, %v563
      %568 = vrot.lane.b32.xlu0 %v241, 87
      %v569 = vpop.permute.xlu0 %568
      %v570 = vrot.slane %v569, 1
      %v571 = vrot.slane %v569, 2
      %vm572 = vcmask 711680
      %v573 = vsel %vm572, %v570, %v571
      %s575 = scalar_lea.vmem [#allocation2], 131
      %576 = vst.msk [vmem:[%s575] ss:$8 sm:$0xf] %vm253, %v573
      %577 = vst.msk [vmem:[%s575] ss:$8 sm:$0x0] %vm253, %v573
      %578 = vrot.lane.b32.xlu0 %v241, 86
      %v579 = vpop.permute.xlu0 %578
      %v580 = vrot.slane %v579, 1
      %v581 = vrot.slane %v579, 2
      %vm582 = vcmask 703488
      %v583 = vsel %vm582, %v580, %v581
      %s585 = scalar_lea.vmem [#allocation2], 132
      %586 = vst.msk [vmem:[%s585] ss:$8 sm:$0xf] %vm253, %v583
      %587 = vst.msk [vmem:[%s585] ss:$8 sm:$0x0] %vm253, %v583
      %588 = vrot.lane.b32.xlu0 %v241, 85
      %v589 = vpop.permute.xlu0 %588
      %v590 = vrot.slane %v589, 1
      %v591 = vrot.slane %v589, 2
      %vm592 = vcmask 695296
      %v593 = vsel %vm592, %v590, %v591
      %s595 = scalar_lea.vmem [#allocation2], 133
      %596 = vst.msk [vmem:[%s595] ss:$8 sm:$0xf] %vm253, %v593
      %597 = vst.msk [vmem:[%s595] ss:$8 sm:$0x0] %vm253, %v593
      %598 = vrot.lane.b32.xlu0 %v241, 84
      %v599 = vpop.permute.xlu0 %598
      %v600 = vrot.slane %v599, 1
      %v601 = vrot.slane %v599, 2
      %vm602 = vcmask 687104
      %v603 = vsel %vm602, %v600, %v601
      %s605 = scalar_lea.vmem [#allocation2], 134
      %606 = vst.msk [vmem:[%s605] ss:$8 sm:$0xf] %vm253, %v603
      %607 = vst.msk [vmem:[%s605] ss:$8 sm:$0x0] %vm253, %v603
      %608 = vrot.lane.b32.xlu0 %v241, 83
      %v609 = vpop.permute.xlu0 %608
      %v610 = vrot.slane %v609, 1
      %v611 = vrot.slane %v609, 2
      %vm612 = vcmask 678912
      %v613 = vsel %vm612, %v610, %v611
      %s615 = scalar_lea.vmem [#allocation2], 135
      %616 = vst.msk [vmem:[%s615] ss:$8 sm:$0xf] %vm253, %v613
      %617 = vst.msk [vmem:[%s615] ss:$8 sm:$0x0] %vm253, %v613
      %618 = vrot.lane.b32.xlu0 %v241, 82
      %v619 = vpop.permute.xlu0 %618
      %v620 = vrot.slane %v619, 1
      %v621 = vrot.slane %v619, 2
      %vm622 = vcmask 670720
      %v623 = vsel %vm622, %v620, %v621
      %s625 = scalar_lea.vmem [#allocation2], 160
      %626 = vst.msk [vmem:[%s625] ss:$8 sm:$0xf] %vm253, %v623
      %627 = vst.msk [vmem:[%s625] ss:$8 sm:$0x0] %vm253, %v623
      %628 = vrot.lane.b32.xlu0 %v241, 81
      %v629 = vpop.permute.xlu0 %628
      %v630 = vrot.slane %v629, 1
      %v631 = vrot.slane %v629, 2
      %vm632 = vcmask 662528
      %v633 = vsel %vm632, %v630, %v631
      %s635 = scalar_lea.vmem [#allocation2], 161
      %636 = vst.msk [vmem:[%s635] ss:$8 sm:$0xf] %vm253, %v633
      %637 = vst.msk [vmem:[%s635] ss:$8 sm:$0x0] %vm253, %v633
      %v638 = vrot.slane %v284, 2
      %v639 = vsel %vm286, %v285, %v638
      %s641 = scalar_lea.vmem [#allocation2], 162
      %642 = vst.msk [vmem:[%s641] ss:$8 sm:$0xf] %vm253, %v639
      %643 = vst.msk [vmem:[%s641] ss:$8 sm:$0x0] %vm253, %v639
      %v644 = vrot.slane %v293, 2
      %v645 = vsel %vm295, %v294, %v644
      %s647 = scalar_lea.vmem [#allocation2], 163
      %648 = vst.msk [vmem:[%s647] ss:$8 sm:$0xf] %vm253, %v645
      %649 = vst.msk [vmem:[%s647] ss:$8 sm:$0x0] %vm253, %v645
      %v650 = vrot.slane %v302, 2
      %v651 = vsel %vm304, %v303, %v650
      %s653 = scalar_lea.vmem [#allocation2], 164
      %654 = vst.msk [vmem:[%s653] ss:$8 sm:$0xf] %vm253, %v651
      %655 = vst.msk [vmem:[%s653] ss:$8 sm:$0x0] %vm253, %v651
      %656 = vrot.lane.b32.xlu0 %v241, 62
      %v657 = vpop.permute.xlu0 %656
      %v658 = vrot.slane %v657, 1
      %v659 = vrot.slane %v657, 2
      %vm660 = vcmask 506880
      %v661 = vsel %vm660, %v658, %v659
      %s663 = scalar_lea.vmem [#allocation2], 165
      %664 = vst.msk [vmem:[%s663] ss:$8 sm:$0xf] %vm253, %v661
      %665 = vst.msk [vmem:[%s663] ss:$8 sm:$0x0] %vm253, %v661
      %666 = vrot.lane.b32.xlu0 %v241, 61
      %v667 = vpop.permute.xlu0 %666
      %v668 = vrot.slane %v667, 1
      %v669 = vrot.slane %v667, 2
      %vm670 = vcmask 498688
      %v671 = vsel %vm670, %v668, %v669
      %s673 = scalar_lea.vmem [#allocation2], 166
      %674 = vst.msk [vmem:[%s673] ss:$8 sm:$0xf] %vm253, %v671
      %675 = vst.msk [vmem:[%s673] ss:$8 sm:$0x0] %vm253, %v671
      %676 = vrot.lane.b32.xlu0 %v241, 60
      %v677 = vpop.permute.xlu0 %676
      %v678 = vrot.slane %v677, 1
      %v679 = vrot.slane %v677, 2
      %vm680 = vcmask 490496
      %v681 = vsel %vm680, %v678, %v679
      %s683 = scalar_lea.vmem [#allocation2], 167
      %684 = vst.msk [vmem:[%s683] ss:$8 sm:$0xf] %vm253, %v681
      %685 = vst.msk [vmem:[%s683] ss:$8 sm:$0x0] %vm253, %v681
      %686 = vrot.lane.b32.xlu0 %v241, 59
      %v687 = vpop.permute.xlu0 %686
      %v688 = vrot.slane %v687, 1
      %v689 = vrot.slane %v687, 2
      %vm690 = vcmask 482304
      %v691 = vsel %vm690, %v688, %v689
      %s693 = scalar_lea.vmem [#allocation2], 192
      %694 = vst.msk [vmem:[%s693] ss:$8 sm:$0xf] %vm253, %v691
      %695 = vst.msk [vmem:[%s693] ss:$8 sm:$0x0] %vm253, %v691
      %v696 = vld [vmem:[%s2] sm:$0xff]
      %v697 = vld [vmem:[%s2 + $0x8] sm:$0xff]
      %v698 = vld [vmem:[%s2 + $0x10] sm:$0xff]
      %v699 = vld [vmem:[%s2 + $0x18] sm:$0xff]
      %v700 = vld [vmem:[%s2 + $0x20] sm:$0xff]
      %v701 = vld [vmem:[%s2 + $0x28] sm:$0xff]
      %v702 = vld [vmem:[%s2 + $0x30] sm:$0xff]
      %v703 = vld [vmem:[%s2 + $0x38] sm:$0xff]
      %v704 = vld [vmem:[#allocation2] sm:$0xff]
      %v705 = vld [vmem:[#allocation2 + $0x8] sm:$0xff]
      %v706 = vld [vmem:[#allocation2 + $0x10] sm:$0xff]
      %v707 = vld [vmem:[#allocation2 + $0x18] sm:$0xff]
      %v708 = vld [vmem:[#allocation2 + $0x20] sm:$0xff]
      %v709 = vld [vmem:[#allocation2 + $0x28] sm:$0xff]
      %v710 = vld [vmem:[#allocation2 + $0x30] sm:$0xff]
      %v711 = vld [vmem:[#allocation2 + $0x38] sm:$0xff]
      %v712 = vld [vmem:[#allocation2 + $0x40] sm:$0xff]
      %v713 = vld [vmem:[#allocation2 + $0x48] sm:$0xff]
      %v714 = vld [vmem:[#allocation2 + $0x50] sm:$0xff]
      %v715 = vld [vmem:[#allocation2 + $0x58] sm:$0xff]
      %v716 = vld [vmem:[#allocation2 + $0x60] sm:$0xff]
      %v717 = vld [vmem:[#allocation2 + $0x68] sm:$0xff]
      %v718 = vld [vmem:[#allocation2 + $0x70] sm:$0xff]
      %v719 = vld [vmem:[#allocation2 + $0x78] sm:$0xff]
      %v720 = vld [vmem:[#allocation2 + $0x80] sm:$0xff]
      %v721 = vld [vmem:[#allocation2 + $0x88] sm:$0xff]
      %v722 = vld [vmem:[#allocation2 + $0x90] sm:$0xff]
      %v723 = vld [vmem:[#allocation2 + $0x98] sm:$0xff]
      %v724 = vld [vmem:[#allocation2 + $0xa0] sm:$0xff]
      %v725 = vld [vmem:[#allocation2 + $0xa8] sm:$0xff]
      %v726 = vld [vmem:[#allocation2 + $0xb0] sm:$0xff]
      %v727 = vld [vmem:[#allocation2 + $0xb8] sm:$0xff]
      %v728 = vld [vmem:[#allocation2 + $0xc0] sm:$0x1]
      %v729 = vld [vmem:[#allocation2 + $0xc8] sm:$0x1]
      %v730 = vld [vmem:[#allocation2 + $0xd0] sm:$0x1]
      %v731 = vld [vmem:[#allocation2 + $0xd8] sm:$0x1]
      %vm732 = vcmask 400384
      %v734 = vsel %vm732, %v696, 0
      %v737 = vsel %vm732, %v697, 0
      %v740 = vsel %vm732, %v698, 0
      %v743 = vsel %vm732, %v699, 0
      %v746 = vsel %vm732, %v700, 0
      %v749 = vsel %vm732, %v701, 0
      %v752 = vsel %vm732, %v702, 0
      %v755 = vsel %vm732, %v703, 0
      %vm757 = vcmask 1040384
      %v759 = vsel %vm757, %v728, 0
      %v762 = vsel %vm757, %v729, 0
      %v765 = vsel %vm757, %v730, 0
      %v768 = vsel %vm757, %v731, 0
      %770 = vmatprep.subr.mxu0 0.0
      %771 = vmatpush1.msra.mxu0 0.0
      %772 = vmatprep.subr.mxu0 0.0
      %773 = vmatpush1.msra.mxu0 0.0
      %774 = vmatprep.subr.mxu0 0.0
      %775 = vmatpush1.msra.mxu0 0.0
      %776 = vmatprep.subr.mxu0 0.0
      %777 = vmatpush1.msra.mxu0 0.0
      %778 = vmatprep.subr.mxu0 0.0
      %779 = vmatpush1.msra.mxu0 0.0
      %780 = vmatprep.subr.mxu0 0.0
      %781 = vmatpush1.msra.mxu0 0.0
      %782 = vmatprep.subr.mxu0 0.0
      %783 = vmatpush1.msra.mxu0 0.0
      %784 = vmatprep.subr.mxu0 0.0
      %785 = vmatpush1.msra.mxu0 0.0
      %786 = vmatprep.subr.mxu0 0.0
      %787 = vmatpush1.msra.mxu0 0.0
      %788 = vmatprep.subr.mxu0 %v762
      %789 = vmatpush1.msra.mxu0 %v759
      %790 = vmatprep.subr.mxu0 %v725
      %791 = vmatpush1.msra.mxu0 %v724
      %792 = vmatprep.subr.mxu0 %v721
      %793 = vmatpush1.msra.mxu0 %v720
      %794 = vmatprep.subr.mxu0 %v717
      %795 = vmatpush1.msra.mxu0 %v716
      %796 = vmatprep.subr.mxu0 %v713
      %797 = vmatpush1.msra.mxu0 %v712
      %798 = vmatprep.subr.mxu0 %v709
      %799 = vmatpush1.msra.mxu0 %v708
      %800 = vmatprep.subr.mxu0 %v705
      %801 = vmatpush1.msra.mxu0 %v704
      %802 = vmatprep.subr.mxu0 0.0
      %803 = vmatpush2.msra.mxu0 0.0
      %804 = vmatprep.subr.mxu0 0.0
      %805 = vmatpush2.msra.mxu0 0.0
      %806 = vmatprep.subr.mxu0 0.0
      %807 = vmatpush2.msra.mxu0 0.0
      %808 = vmatprep.subr.mxu0 0.0
      %809 = vmatpush2.msra.mxu0 0.0
      %810 = vmatprep.subr.mxu0 0.0
      %811 = vmatpush2.msra.mxu0 0.0
      %812 = vmatprep.subr.mxu0 0.0
      %813 = vmatpush2.msra.mxu0 0.0
      %814 = vmatprep.subr.mxu0 0.0
      %815 = vmatpush2.msra.mxu0 0.0
      %816 = vmatprep.subr.mxu0 0.0
      %817 = vmatpush2.msra.mxu0 0.0
      %818 = vmatprep.subr.mxu0 0.0
      %819 = vmatpush2.msra.mxu0 0.0
      %820 = vmatprep.subr.mxu0 0.0
      %821 = vmatpush2.msra.mxu0 0.0
      %822 = vmatprep.subr.mxu0 0.0
      %823 = vmatpush2.msra.mxu0 0.0
      %824 = vmatprep.subr.mxu0 0.0
      %825 = vmatpush2.msra.mxu0 0.0
      %826 = vmatprep.subr.mxu0 0.0
      %827 = vmatpush2.msra.mxu0 0.0
      %828 = vmatprep.subr.mxu0 0.0
      %829 = vmatpush2.msra.mxu0 0.0
      %830 = vmatprep.subr.mxu0 0.0
      %831 = vmatpush2.msra.mxu0 0.0
      %832 = vmatprep.subr.mxu0 0.0
      %833 = vmatpush2.msra.mxu0 0.0
      %834 = vmatprep.mubr.f32.mxu0 0.0
      %835 = vmatmul.mubr.f32.gmra.mxu0 %v734
      %v836 = vpop.f32.mrf.mxu0
      %v837 = vadd.f32 0.0, %v836
      %v838 = vpop.f32.mrf.mxu0
      %v839 = vadd.f32 0.0, %v838
      %840 = vmatprep.mubr.f32.mxu0 0.0
      %841 = vmatmul.mubr.f32.gmra.mxu0 %v737
      %v842 = vpop.f32.mrf.mxu0
      %v843 = vadd.f32 0.0, %v842
      %v844 = vpop.f32.mrf.mxu0
      %v845 = vadd.f32 0.0, %v844
      %846 = vmatprep.mubr.f32.mxu0 0.0
      %847 = vmatmul.mubr.f32.gmra.mxu0 %v740
      %v848 = vpop.f32.mrf.mxu0
      %v849 = vadd.f32 0.0, %v848
      %v850 = vpop.f32.mrf.mxu0
      %v851 = vadd.f32 0.0, %v850
      %852 = vmatprep.mubr.f32.mxu0 0.0
      %853 = vmatmul.mubr.f32.gmra.mxu0 %v743
      %v854 = vpop.f32.mrf.mxu0
      %v855 = vadd.f32 0.0, %v854
      %v856 = vpop.f32.mrf.mxu0
      %v857 = vadd.f32 0.0, %v856
      %858 = vmatprep.mubr.f32.mxu0 0.0
      %859 = vmatmul.mubr.f32.gmra.mxu0 %v746
      %v860 = vpop.f32.mrf.mxu0
      %v861 = vadd.f32 0.0, %v860
      %v862 = vpop.f32.mrf.mxu0
      %v863 = vadd.f32 0.0, %v862
      %864 = vmatprep.mubr.f32.mxu0 0.0
      %865 = vmatmul.mubr.f32.gmra.mxu0 %v749
      %v866 = vpop.f32.mrf.mxu0
      %v867 = vadd.f32 0.0, %v866
      %v868 = vpop.f32.mrf.mxu0
      %v869 = vadd.f32 0.0, %v868
      %870 = vmatprep.mubr.f32.mxu0 0.0
      %871 = vmatmul.mubr.f32.gmra.mxu0 %v752
      %v872 = vpop.f32.mrf.mxu0
      %v873 = vadd.f32 0.0, %v872
      %v874 = vpop.f32.mrf.mxu0
      %v875 = vadd.f32 0.0, %v874
      %876 = vmatprep.mubr.f32.mxu0 0.0
      %877 = vmatmul.mubr.f32.gmra.mxu0 %v755
      %v878 = vpop.f32.mrf.mxu0
      %v879 = vadd.f32 0.0, %v878
      %v880 = vpop.f32.mrf.mxu0
      %v881 = vadd.f32 0.0, %v880
      %882 = vdwg.mxu0
      %883 = vmatprep.subr.mxu0 0.0
      %884 = vmatpush1.msra.mxu0 0.0
      %885 = vmatprep.subr.mxu0 0.0
      %886 = vmatpush1.msra.mxu0 0.0
      %887 = vmatprep.subr.mxu0 0.0
      %888 = vmatpush1.msra.mxu0 0.0
      %889 = vmatprep.subr.mxu0 0.0
      %890 = vmatpush1.msra.mxu0 0.0
      %891 = vmatprep.subr.mxu0 0.0
      %892 = vmatpush1.msra.mxu0 0.0
      %893 = vmatprep.subr.mxu0 0.0
      %894 = vmatpush1.msra.mxu0 0.0
      %895 = vmatprep.subr.mxu0 0.0
      %896 = vmatpush1.msra.mxu0 0.0
      %897 = vmatprep.subr.mxu0 0.0
      %898 = vmatpush1.msra.mxu0 0.0
      %899 = vmatprep.subr.mxu0 0.0
      %900 = vmatpush1.msra.mxu0 0.0
      %901 = vmatprep.subr.mxu0 %v768
      %902 = vmatpush1.msra.mxu0 %v765
      %903 = vmatprep.subr.mxu0 %v727
      %904 = vmatpush1.msra.mxu0 %v726
      %905 = vmatprep.subr.mxu0 %v723
      %906 = vmatpush1.msra.mxu0 %v722
      %907 = vmatprep.subr.mxu0 %v719
      %908 = vmatpush1.msra.mxu0 %v718
      %909 = vmatprep.subr.mxu0 %v715
      %910 = vmatpush1.msra.mxu0 %v714
      %911 = vmatprep.subr.mxu0 %v711
      %912 = vmatpush1.msra.mxu0 %v710
      %913 = vmatprep.subr.mxu0 %v707
      %914 = vmatpush1.msra.mxu0 %v706
      %915 = vmatprep.subr.mxu0 0.0
      %916 = vmatpush2.msra.mxu0 0.0
      %917 = vmatprep.subr.mxu0 0.0
      %918 = vmatpush2.msra.mxu0 0.0
      %919 = vmatprep.subr.mxu0 0.0
      %920 = vmatpush2.msra.mxu0 0.0
      %921 = vmatprep.subr.mxu0 0.0
      %922 = vmatpush2.msra.mxu0 0.0
      %923 = vmatprep.subr.mxu0 0.0
      %924 = vmatpush2.msra.mxu0 0.0
      %925 = vmatprep.subr.mxu0 0.0
      %926 = vmatpush2.msra.mxu0 0.0
      %927 = vmatprep.subr.mxu0 0.0
      %928 = vmatpush2.msra.mxu0 0.0
      %929 = vmatprep.subr.mxu0 0.0
      %930 = vmatpush2.msra.mxu0 0.0
      %931 = vmatprep.subr.mxu0 0.0
      %932 = vmatpush2.msra.mxu0 0.0
      %933 = vmatprep.subr.mxu0 0.0
      %934 = vmatpush2.msra.mxu0 0.0
      %935 = vmatprep.subr.mxu0 0.0
      %936 = vmatpush2.msra.mxu0 0.0
      %937 = vmatprep.subr.mxu0 0.0
      %938 = vmatpush2.msra.mxu0 0.0
      %939 = vmatprep.subr.mxu0 0.0
      %940 = vmatpush2.msra.mxu0 0.0
      %941 = vmatprep.subr.mxu0 0.0
      %942 = vmatpush2.msra.mxu0 0.0
      %943 = vmatprep.subr.mxu0 0.0
      %944 = vmatpush2.msra.mxu0 0.0
      %945 = vmatprep.subr.mxu0 0.0
      %946 = vmatpush2.msra.mxu0 0.0
      %947 = vmatprep.mubr.f32.mxu0 0.0
      %948 = vmatmul.mubr.f32.gmra.mxu0 %v734
      %v949 = vpop.f32.mrf.mxu0
      %v950 = vadd.f32 0.0, %v949
      %v951 = vpop.f32.mrf.mxu0
      %v952 = vadd.f32 0.0, %v951
      %953 = vmatprep.mubr.f32.mxu0 0.0
      %954 = vmatmul.mubr.f32.gmra.mxu0 %v737
      %v955 = vpop.f32.mrf.mxu0
      %v956 = vadd.f32 0.0, %v955
      %v957 = vpop.f32.mrf.mxu0
      %v958 = vadd.f32 0.0, %v957
      %959 = vmatprep.mubr.f32.mxu0 0.0
      %960 = vmatmul.mubr.f32.gmra.mxu0 %v740
      %v961 = vpop.f32.mrf.mxu0
      %v962 = vadd.f32 0.0, %v961
      %v963 = vpop.f32.mrf.mxu0
      %v964 = vadd.f32 0.0, %v963
      %965 = vmatprep.mubr.f32.mxu0 0.0
      %966 = vmatmul.mubr.f32.gmra.mxu0 %v743
      %v967 = vpop.f32.mrf.mxu0
      %v968 = vadd.f32 0.0, %v967
      %v969 = vpop.f32.mrf.mxu0
      %v970 = vadd.f32 0.0, %v969
      %971 = vmatprep.mubr.f32.mxu0 0.0
      %972 = vmatmul.mubr.f32.gmra.mxu0 %v746
      %v973 = vpop.f32.mrf.mxu0
      %v974 = vadd.f32 0.0, %v973
      %v975 = vpop.f32.mrf.mxu0
      %v976 = vadd.f32 0.0, %v975
      %977 = vmatprep.mubr.f32.mxu0 0.0
      %978 = vmatmul.mubr.f32.gmra.mxu0 %v749
      %v979 = vpop.f32.mrf.mxu0
      %v980 = vadd.f32 0.0, %v979
      %v981 = vpop.f32.mrf.mxu0
      %v982 = vadd.f32 0.0, %v981
      %983 = vmatprep.mubr.f32.mxu0 0.0
      %984 = vmatmul.mubr.f32.gmra.mxu0 %v752
      %v985 = vpop.f32.mrf.mxu0
      %v986 = vadd.f32 0.0, %v985
      %v987 = vpop.f32.mrf.mxu0
      %v988 = vadd.f32 0.0, %v987
      %989 = vmatprep.mubr.f32.mxu0 0.0
      %990 = vmatmul.mubr.f32.gmra.mxu0 %v755
      %v991 = vpop.f32.mrf.mxu0
      %v992 = vadd.f32 0.0, %v991
      %v993 = vpop.f32.mrf.mxu0
      %v994 = vadd.f32 0.0, %v993
      %995 = vdwg.mxu0
      %v997 = vlaneseq
      %v998 = vshrl.u32 %v997, 7
      %v999 = vsub.s32 0, %v998
      %v1000 = vrot.slane %v242, %v999
      %v1001 = vlaneseq
      %v1002 = vshrl.u32 %v1001, 7
      %v1003 = vsub.s32 1, %v1002
      %v1004 = vrot.slane %v242, %v1003
      %v1005 = vlaneseq
      %v1006 = vshrl.u32 %v1005, 7
      %v1007 = vsub.s32 2, %v1006
      %v1008 = vrot.slane %v242, %v1007
      %v1009 = vlaneseq
      %v1010 = vshrl.u32 %v1009, 7
      %v1011 = vsub.s32 3, %v1010
      %v1012 = vrot.slane %v242, %v1011
      %v1017 = vmul.f32 %v837, %v1000
      %v1018 = vmul.f32 %v839, %v1004
      %v1019 = vmul.f32 %v950, %v1008
      %v1020 = vmul.f32 %v952, %v1012
      %v1021 = vmul.f32 %v843, %v1000
      %v1022 = vmul.f32 %v845, %v1004
      %v1023 = vmul.f32 %v956, %v1008
      %v1024 = vmul.f32 %v958, %v1012
      %v1025 = vmul.f32 %v849, %v1000
      %v1026 = vmul.f32 %v851, %v1004
      %v1027 = vmul.f32 %v962, %v1008
      %v1028 = vmul.f32 %v964, %v1012
      %v1029 = vmul.f32 %v855, %v1000
      %v1030 = vmul.f32 %v857, %v1004
      %v1031 = vmul.f32 %v968, %v1008
      %v1032 = vmul.f32 %v970, %v1012
      %v1033 = vmul.f32 %v861, %v1000
      %v1034 = vmul.f32 %v863, %v1004
      %v1035 = vmul.f32 %v974, %v1008
      %v1036 = vmul.f32 %v976, %v1012
      %v1037 = vmul.f32 %v867, %v1000
      %v1038 = vmul.f32 %v869, %v1004
      %v1039 = vmul.f32 %v980, %v1008
      %v1040 = vmul.f32 %v982, %v1012
      %v1041 = vmul.f32 %v873, %v1000
      %v1042 = vmul.f32 %v875, %v1004
      %v1043 = vmul.f32 %v986, %v1008
      %v1044 = vmul.f32 %v988, %v1012
      %v1045 = vmul.f32 %v879, %v1000
      %v1046 = vmul.f32 %v881, %v1004
      %v1047 = vmul.f32 %v992, %v1008
      %v1048 = vmul.f32 %v994, %v1012
      %v1049 = vadd.f32 %v1017, %v1018
      %v1050 = vadd.f32 %v1049, %v1019
      %vm1051 = vcmask 818176
      %v1052 = vsel %vm1051, %v1020, 0.0
      %v1053 = vadd.f32 %v1050, %v1052
      %1054 = vadd.xlane.f32.xlu0 %v1053
      %v1055 = vpop.xlane.xlu0 %1054
      %v1056 = vadd.f32 %v1021, %v1022
      %v1057 = vadd.f32 %v1056, %v1023
      %v1058 = vsel %vm1051, %v1024, 0.0
      %v1059 = vadd.f32 %v1057, %v1058
      %1060 = vadd.xlane.f32.xlu0 %v1059
      %v1061 = vpop.xlane.xlu0 %1060
      %v1062 = vadd.f32 %v1025, %v1026
      %v1063 = vadd.f32 %v1062, %v1027
      %v1064 = vsel %vm1051, %v1028, 0.0
      %v1065 = vadd.f32 %v1063, %v1064
      %1066 = vadd.xlane.f32.xlu0 %v1065
      %v1067 = vpop.xlane.xlu0 %1066
      %v1068 = vadd.f32 %v1029, %v1030
      %v1069 = vadd.f32 %v1068, %v1031
      %v1070 = vsel %vm1051, %v1032, 0.0
      %v1071 = vadd.f32 %v1069, %v1070
      %1072 = vadd.xlane.f32.xlu0 %v1071
      %v1073 = vpop.xlane.xlu0 %1072
      %v1074 = vadd.f32 %v1033, %v1034
      %v1075 = vadd.f32 %v1074, %v1035
      %v1076 = vsel %vm1051, %v1036, 0.0
      %v1077 = vadd.f32 %v1075, %v1076
      %1078 = vadd.xlane.f32.xlu0 %v1077
      %v1079 = vpop.xlane.xlu0 %1078
      %v1080 = vadd.f32 %v1037, %v1038
      %v1081 = vadd.f32 %v1080, %v1039
      %v1082 = vsel %vm1051, %v1040, 0.0
      %v1083 = vadd.f32 %v1081, %v1082
      %1084 = vadd.xlane.f32.xlu0 %v1083
      %v1085 = vpop.xlane.xlu0 %1084
      %v1086 = vadd.f32 %v1041, %v1042
      %v1087 = vadd.f32 %v1086, %v1043
      %v1088 = vsel %vm1051, %v1044, 0.0
      %v1089 = vadd.f32 %v1087, %v1088
      %1090 = vadd.xlane.f32.xlu0 %v1089
      %v1091 = vpop.xlane.xlu0 %1090
      %v1092 = vadd.f32 %v1045, %v1046
      %v1093 = vadd.f32 %v1092, %v1047
      %v1094 = vsel %vm1051, %v1048, 0.0
      %v1095 = vadd.f32 %v1093, %v1094
      %1096 = vadd.xlane.f32.xlu0 %v1095
      %v1097 = vpop.xlane.xlu0 %1096
      %v1098 = vmul.f32 %v1055, 0.00390625
      %v1099 = vmul.f32 %v1061, 0.00390625
      %v1100 = vmul.f32 %v1067, 0.00390625
      %v1101 = vmul.f32 %v1073, 0.00390625
      %v1102 = vmul.f32 %v1079, 0.00390625
      %v1103 = vmul.f32 %v1085, 0.00390625
      %v1104 = vmul.f32 %v1091, 0.00390625
      %v1105 = vmul.f32 %v1097, 0.00390625
      %v1106 = vmul.f32 %v1017, %v837
      %v1107 = vmul.f32 %v1018, %v839
      %v1108 = vmul.f32 %v1019, %v950
      %v1109 = vmul.f32 %v1020, %v952
      %v1110 = vmul.f32 %v1021, %v843
      %v1111 = vmul.f32 %v1022, %v845
      %v1112 = vmul.f32 %v1023, %v956
      %v1113 = vmul.f32 %v1024, %v958
      %v1114 = vmul.f32 %v1025, %v849
      %v1115 = vmul.f32 %v1026, %v851
      %v1116 = vmul.f32 %v1027, %v962
      %v1117 = vmul.f32 %v1028, %v964
      %v1118 = vmul.f32 %v1029, %v855
      %v1119 = vmul.f32 %v1030, %v857
      %v1120 = vmul.f32 %v1031, %v968
      %v1121 = vmul.f32 %v1032, %v970
      %v1122 = vmul.f32 %v1033, %v861
      %v1123 = vmul.f32 %v1034, %v863
      %v1124 = vmul.f32 %v1035, %v974
      %v1125 = vmul.f32 %v1036, %v976
      %v1126 = vmul.f32 %v1037, %v867
      %v1127 = vmul.f32 %v1038, %v869
      %v1128 = vmul.f32 %v1039, %v980
      %v1129 = vmul.f32 %v1040, %v982
      %v1130 = vmul.f32 %v1041, %v873
      %v1131 = vmul.f32 %v1042, %v875
      %v1132 = vmul.f32 %v1043, %v986
      %v1133 = vmul.f32 %v1044, %v988
      %v1134 = vmul.f32 %v1045, %v879
      %v1135 = vmul.f32 %v1046, %v881
      %v1136 = vmul.f32 %v1047, %v992
      %v1137 = vmul.f32 %v1048, %v994
      %v1138 = vadd.f32 %v1106, %v1107
      %v1139 = vadd.f32 %v1138, %v1108
      %v1140 = vsel %vm1051, %v1109, 0.0
      %v1141 = vadd.f32 %v1139, %v1140
      %1142 = vadd.xlane.f32.xlu0 %v1141
      %v1143 = vpop.xlane.xlu0 %1142
      %v1144 = vadd.f32 %v1110, %v1111
      %v1145 = vadd.f32 %v1144, %v1112
      %v1146 = vsel %vm1051, %v1113, 0.0
      %v1147 = vadd.f32 %v1145, %v1146
      %1148 = vadd.xlane.f32.xlu0 %v1147
      %v1149 = vpop.xlane.xlu0 %1148
      %v1150 = vadd.f32 %v1114, %v1115
      %v1151 = vadd.f32 %v1150, %v1116
      %v1152 = vsel %vm1051, %v1117, 0.0
      %v1153 = vadd.f32 %v1151, %v1152
      %1154 = vadd.xlane.f32.xlu0 %v1153
      %v1155 = vpop.xlane.xlu0 %1154
      %v1156 = vadd.f32 %v1118, %v1119
      %v1157 = vadd.f32 %v1156, %v1120
      %v1158 = vsel %vm1051, %v1121, 0.0
      %v1159 = vadd.f32 %v1157, %v1158
      %1160 = vadd.xlane.f32.xlu0 %v1159
      %v1161 = vpop.xlane.xlu0 %1160
      %v1162 = vadd.f32 %v1122, %v1123
      %v1163 = vadd.f32 %v1162, %v1124
      %v1164 = vsel %vm1051, %v1125, 0.0
      %v1165 = vadd.f32 %v1163, %v1164
      %1166 = vadd.xlane.f32.xlu0 %v1165
      %v1167 = vpop.xlane.xlu0 %1166
      %v1168 = vadd.f32 %v1126, %v1127
      %v1169 = vadd.f32 %v1168, %v1128
      %v1170 = vsel %vm1051, %v1129, 0.0
      %v1171 = vadd.f32 %v1169, %v1170
      %1172 = vadd.xlane.f32.xlu0 %v1171
      %v1173 = vpop.xlane.xlu0 %1172
      %v1174 = vadd.f32 %v1130, %v1131
      %v1175 = vadd.f32 %v1174, %v1132
      %v1176 = vsel %vm1051, %v1133, 0.0
      %v1177 = vadd.f32 %v1175, %v1176
      %1178 = vadd.xlane.f32.xlu0 %v1177
      %v1179 = vpop.xlane.xlu0 %1178
      %v1180 = vadd.f32 %v1134, %v1135
      %v1181 = vadd.f32 %v1180, %v1136
      %v1182 = vsel %vm1051, %v1137, 0.0
      %v1183 = vadd.f32 %v1181, %v1182
      %1184 = vadd.xlane.f32.xlu0 %v1183
      %v1185 = vpop.xlane.xlu0 %1184
      %v1186 = vmul.f32 %v1143, 0.00390625
      %v1187 = vmul.f32 %v1149, 0.00390625
      %v1188 = vmul.f32 %v1155, 0.00390625
      %v1189 = vmul.f32 %v1161, 0.00390625
      %v1190 = vmul.f32 %v1167, 0.00390625
      %v1191 = vmul.f32 %v1173, 0.00390625
      %v1192 = vmul.f32 %v1179, 0.00390625
      %v1193 = vmul.f32 %v1185, 0.00390625
      %v1194 = vmul.f32 %v1098, %v1098
      %v1195 = vmul.f32 %v1099, %v1099
      %v1196 = vmul.f32 %v1100, %v1100
      %v1197 = vmul.f32 %v1101, %v1101
      %v1198 = vmul.f32 %v1102, %v1102
      %v1199 = vmul.f32 %v1103, %v1103
      %v1200 = vmul.f32 %v1104, %v1104
      %v1201 = vmul.f32 %v1105, %v1105
      %v1202 = vsub.f32 %v1186, %v1194
      %v1203 = vsub.f32 %v1187, %v1195
      %v1204 = vsub.f32 %v1188, %v1196
      %v1205 = vsub.f32 %v1189, %v1197
      %v1206 = vsub.f32 %v1190, %v1198
      %v1207 = vsub.f32 %v1191, %v1199
      %v1208 = vsub.f32 %v1192, %v1200
      %v1209 = vsub.f32 %v1193, %v1201
      %v1210 = vadd.f32 %v1202, 1e-05
      %v1211 = vadd.f32 %v1203, 1e-05
      %v1212 = vadd.f32 %v1204, 1e-05
      %v1213 = vadd.f32 %v1205, 1e-05
      %v1214 = vadd.f32 %v1206, 1e-05
      %v1215 = vadd.f32 %v1207, 1e-05
      %v1216 = vadd.f32 %v1208, 1e-05
      %v1217 = vadd.f32 %v1209, 1e-05
      %v1218 = vrsqrt.pop %v1210
      %v1219 = vrsqrt.pop %v1211
      %v1220 = vrsqrt.pop %v1212
      %v1221 = vrsqrt.pop %v1213
      %v1222 = vrsqrt.pop %v1214
      %v1223 = vrsqrt.pop %v1215
      %v1224 = vrsqrt.pop %v1216
      %v1225 = vrsqrt.pop %v1217
      %v1226 = vsub.f32 %v837, %v1098
      %v1227 = vsub.f32 %v839, %v1098
      %v1228 = vsub.f32 %v950, %v1098
      %v1229 = vsub.f32 %v952, %v1098
      %v1230 = vsub.f32 %v843, %v1099
      %v1231 = vsub.f32 %v845, %v1099
      %v1232 = vsub.f32 %v956, %v1099
      %v1233 = vsub.f32 %v958, %v1099
      %v1234 = vsub.f32 %v849, %v1100
      %v1235 = vsub.f32 %v851, %v1100
      %v1236 = vsub.f32 %v962, %v1100
      %v1237 = vsub.f32 %v964, %v1100
      %v1238 = vsub.f32 %v855, %v1101
      %v1239 = vsub.f32 %v857, %v1101
      %v1240 = vsub.f32 %v968, %v1101
      %v1241 = vsub.f32 %v970, %v1101
      %v1242 = vsub.f32 %v861, %v1102
      %v1243 = vsub.f32 %v863, %v1102
      %v1244 = vsub.f32 %v974, %v1102
      %v1245 = vsub.f32 %v976, %v1102
      %v1246 = vsub.f32 %v867, %v1103
      %v1247 = vsub.f32 %v869, %v1103
      %v1248 = vsub.f32 %v980, %v1103
      %v1249 = vsub.f32 %v982, %v1103
      %v1250 = vsub.f32 %v873, %v1104
      %v1251 = vsub.f32 %v875, %v1104
      %v1252 = vsub.f32 %v986, %v1104
      %v1253 = vsub.f32 %v988, %v1104
      %v1254 = vsub.f32 %v879, %v1105
      %v1255 = vsub.f32 %v881, %v1105
      %v1256 = vsub.f32 %v992, %v1105
      %v1257 = vsub.f32 %v994, %v1105
      %v1258 = vmul.f32 %v1226, %v1218
      %v1259 = vmul.f32 %v1227, %v1218
      %v1260 = vmul.f32 %v1228, %v1218
      %v1261 = vmul.f32 %v1229, %v1218
      %v1262 = vmul.f32 %v1230, %v1219
      %v1263 = vmul.f32 %v1231, %v1219
      %v1264 = vmul.f32 %v1232, %v1219
      %v1265 = vmul.f32 %v1233, %v1219
      %v1266 = vmul.f32 %v1234, %v1220
      %v1267 = vmul.f32 %v1235, %v1220
      %v1268 = vmul.f32 %v1236, %v1220
      %v1269 = vmul.f32 %v1237, %v1220
      %v1270 = vmul.f32 %v1238, %v1221
      %v1271 = vmul.f32 %v1239, %v1221
      %v1272 = vmul.f32 %v1240, %v1221
      %v1273 = vmul.f32 %v1241, %v1221
      %v1274 = vmul.f32 %v1242, %v1222
      %v1275 = vmul.f32 %v1243, %v1222
      %v1276 = vmul.f32 %v1244, %v1222
      %v1277 = vmul.f32 %v1245, %v1222
      %v1278 = vmul.f32 %v1246, %v1223
      %v1279 = vmul.f32 %v1247, %v1223
      %v1280 = vmul.f32 %v1248, %v1223
      %v1281 = vmul.f32 %v1249, %v1223
      %v1282 = vmul.f32 %v1250, %v1224
      %v1283 = vmul.f32 %v1251, %v1224
      %v1284 = vmul.f32 %v1252, %v1224
      %v1285 = vmul.f32 %v1253, %v1224
      %v1286 = vmul.f32 %v1254, %v1225
      %v1287 = vmul.f32 %v1255, %v1225
      %v1288 = vmul.f32 %v1256, %v1225
      %v1289 = vmul.f32 %v1257, %v1225
      %v1290 = vmax.f32 %v1258, 0.0
      %v1291 = vmax.f32 %v1259, 0.0
      %v1292 = vmax.f32 %v1260, 0.0
      %v1293 = vmax.f32 %v1261, 0.0
      %v1294 = vmax.f32 %v1262, 0.0
      %v1295 = vmax.f32 %v1263, 0.0
      %v1296 = vmax.f32 %v1264, 0.0
      %v1297 = vmax.f32 %v1265, 0.0
      %v1298 = vmax.f32 %v1266, 0.0
      %v1299 = vmax.f32 %v1267, 0.0
      %v1300 = vmax.f32 %v1268, 0.0
      %v1301 = vmax.f32 %v1269, 0.0
      %v1302 = vmax.f32 %v1270, 0.0
      %v1303 = vmax.f32 %v1271, 0.0
      %v1304 = vmax.f32 %v1272, 0.0
      %v1305 = vmax.f32 %v1273, 0.0
      %v1306 = vmax.f32 %v1274, 0.0
      %v1307 = vmax.f32 %v1275, 0.0
      %v1308 = vmax.f32 %v1276, 0.0
      %v1309 = vmax.f32 %v1277, 0.0
      %v1310 = vmax.f32 %v1278, 0.0
      %v1311 = vmax.f32 %v1279, 0.0
      %v1312 = vmax.f32 %v1280, 0.0
      %v1313 = vmax.f32 %v1281, 0.0
      %v1314 = vmax.f32 %v1282, 0.0
      %v1315 = vmax.f32 %v1283, 0.0
      %v1316 = vmax.f32 %v1284, 0.0
      %v1317 = vmax.f32 %v1285, 0.0
      %v1318 = vmax.f32 %v1286, 0.0
      %v1319 = vmax.f32 %v1287, 0.0
      %v1320 = vmax.f32 %v1288, 0.0
      %v1321 = vmax.f32 %v1289, 0.0
      %v1322 = vmul.f32 %v1290, %v1000
      %v1323 = vmul.f32 %v1291, %v1004
      %v1324 = vmul.f32 %v1292, %v1008
      %v1325 = vmul.f32 %v1293, %v1012
      %v1326 = vmul.f32 %v1294, %v1000
      %v1327 = vmul.f32 %v1295, %v1004
      %v1328 = vmul.f32 %v1296, %v1008
      %v1329 = vmul.f32 %v1297, %v1012
      %v1330 = vmul.f32 %v1298, %v1000
      %v1331 = vmul.f32 %v1299, %v1004
      %v1332 = vmul.f32 %v1300, %v1008
      %v1333 = vmul.f32 %v1301, %v1012
      %v1334 = vmul.f32 %v1302, %v1000
      %v1335 = vmul.f32 %v1303, %v1004
      %v1336 = vmul.f32 %v1304, %v1008
      %v1337 = vmul.f32 %v1305, %v1012
      %v1338 = vmul.f32 %v1306, %v1000
      %v1339 = vmul.f32 %v1307, %v1004
      %v1340 = vmul.f32 %v1308, %v1008
      %v1341 = vmul.f32 %v1309, %v1012
      %v1342 = vmul.f32 %v1310, %v1000
      %v1343 = vmul.f32 %v1311, %v1004
      %v1344 = vmul.f32 %v1312, %v1008
      %v1345 = vmul.f32 %v1313, %v1012
      %v1346 = vmul.f32 %v1314, %v1000
      %v1347 = vmul.f32 %v1315, %v1004
      %v1348 = vmul.f32 %v1316, %v1008
      %v1349 = vmul.f32 %v1317, %v1012
      %v1350 = vmul.f32 %v1318, %v1000
      %v1351 = vmul.f32 %v1319, %v1004
      %v1352 = vmul.f32 %v1320, %v1008
      %v1353 = vmul.f32 %v1321, %v1012
      %v1354 = vld [vmem:[%s3] sm:$0xff]
      %v1355 = vld [vmem:[%s3 + $0x8] sm:$0xff]
      %v1356 = vld [vmem:[%s3 + $0x10] sm:$0xff]
      %v1357 = vld [vmem:[%s3 + $0x18] sm:$0xff]
      %v1358 = vld [vmem:[%s3 + $0x20] sm:$0xff]
      %v1359 = vld [vmem:[%s3 + $0x28] sm:$0xff]
      %v1360 = vld [vmem:[%s3 + $0x30] sm:$0x1]
      %v1362 = vsel %vm295, %v1354, 0
      %v1365 = vsel %vm295, %v1355, 0
      %v1368 = vsel %vm295, %v1356, 0
      %v1371 = vsel %vm295, %v1357, 0
      %v1374 = vsel %vm295, %v1358, 0
      %v1377 = vsel %vm295, %v1359, 0
      %v1380 = vsel %vm295, %v1360, 0
      %1382 = vmatprep.subr.mxu0 0.0
      %1383 = vmatpush1.msra.mxu0 0.0
      %1384 = vmatprep.subr.mxu0 0.0
      %1385 = vmatpush1.msra.mxu0 0.0
      %1386 = vmatprep.subr.mxu0 0.0
      %1387 = vmatpush1.msra.mxu0 0.0
      %1388 = vmatprep.subr.mxu0 0.0
      %1389 = vmatpush1.msra.mxu0 0.0
      %1390 = vmatprep.subr.mxu0 0.0
      %1391 = vmatpush1.msra.mxu0 0.0
      %1392 = vmatprep.subr.mxu0 0.0
      %1393 = vmatpush1.msra.mxu0 0.0
      %1394 = vmatprep.subr.mxu0 0.0
      %1395 = vmatpush1.msra.mxu0 0.0
      %1396 = vmatprep.subr.mxu0 0.0
      %1397 = vmatpush1.msra.mxu0 0.0
      %1398 = vmatprep.subr.mxu0 %v1351
      %1399 = vmatpush1.msra.mxu0 %v1350
      %1400 = vmatprep.subr.mxu0 %v1347
      %1401 = vmatpush1.msra.mxu0 %v1346
      %1402 = vmatprep.subr.mxu0 %v1343
      %1403 = vmatpush1.msra.mxu0 %v1342
      %1404 = vmatprep.subr.mxu0 %v1339
      %1405 = vmatpush1.msra.mxu0 %v1338
      %1406 = vmatprep.subr.mxu0 %v1335
      %1407 = vmatpush1.msra.mxu0 %v1334
      %1408 = vmatprep.subr.mxu0 %v1331
      %1409 = vmatpush1.msra.mxu0 %v1330
      %1410 = vmatprep.subr.mxu0 %v1327
      %1411 = vmatpush1.msra.mxu0 %v1326
      %1412 = vmatprep.subr.mxu0 %v1323
      %1413 = vmatpush1.msra.mxu0 %v1322
      %1414 = vmatprep.subr.mxu0 0.0
      %1415 = vmatpush2.msra.mxu0 0.0
      %1416 = vmatprep.subr.mxu0 0.0
      %1417 = vmatpush2.msra.mxu0 0.0
      %1418 = vmatprep.subr.mxu0 0.0
      %1419 = vmatpush2.msra.mxu0 0.0
      %1420 = vmatprep.subr.mxu0 0.0
      %1421 = vmatpush2.msra.mxu0 0.0
      %1422 = vmatprep.subr.mxu0 0.0
      %1423 = vmatpush2.msra.mxu0 0.0
      %1424 = vmatprep.subr.mxu0 0.0
      %1425 = vmatpush2.msra.mxu0 0.0
      %1426 = vmatprep.subr.mxu0 0.0
      %1427 = vmatpush2.msra.mxu0 0.0
      %1428 = vmatprep.subr.mxu0 0.0
      %1429 = vmatpush2.msra.mxu0 0.0
      %1430 = vmatprep.subr.mxu0 0.0
      %1431 = vmatpush2.msra.mxu0 0.0
      %1432 = vmatprep.subr.mxu0 0.0
      %1433 = vmatpush2.msra.mxu0 0.0
      %1434 = vmatprep.subr.mxu0 0.0
      %1435 = vmatpush2.msra.mxu0 0.0
      %1436 = vmatprep.subr.mxu0 0.0
      %1437 = vmatpush2.msra.mxu0 0.0
      %1438 = vmatprep.subr.mxu0 0.0
      %1439 = vmatpush2.msra.mxu0 0.0
      %1440 = vmatprep.subr.mxu0 0.0
      %1441 = vmatpush2.msra.mxu0 0.0
      %1442 = vmatprep.subr.mxu0 0.0
      %1443 = vmatpush2.msra.mxu0 0.0
      %1444 = vmatprep.subr.mxu0 0.0
      %1445 = vmatpush2.msra.mxu0 0.0
      %1446 = vmatprep.mubr.f32.mxu0 0.0
      %1447 = vmatmul.mubr.f32.gmra.mxu0 %v1362
      %v1448 = vpop.f32.mrf.mxu0
      %v1449 = vadd.f32 0.0, %v1448
      %v1450 = vpop.f32.mrf.mxu0
      %v1451 = vadd.f32 0.0, %v1450
      %1452 = vmatprep.mubr.f32.mxu0 0.0
      %1453 = vmatmul.mubr.f32.gmra.mxu0 %v1365
      %v1454 = vpop.f32.mrf.mxu0
      %v1455 = vadd.f32 0.0, %v1454
      %v1456 = vpop.f32.mrf.mxu0
      %v1457 = vadd.f32 0.0, %v1456
      %1458 = vmatprep.mubr.f32.mxu0 0.0
      %1459 = vmatmul.mubr.f32.gmra.mxu0 %v1368
      %v1460 = vpop.f32.mrf.mxu0
      %v1461 = vadd.f32 0.0, %v1460
      %v1462 = vpop.f32.mrf.mxu0
      %v1463 = vadd.f32 0.0, %v1462
      %1464 = vmatprep.mubr.f32.mxu0 0.0
      %1465 = vmatmul.mubr.f32.gmra.mxu0 %v1371
      %v1466 = vpop.f32.mrf.mxu0
      %v1467 = vadd.f32 0.0, %v1466
      %v1468 = vpop.f32.mrf.mxu0
      %v1469 = vadd.f32 0.0, %v1468
      %1470 = vmatprep.mubr.f32.mxu0 0.0
      %1471 = vmatmul.mubr.f32.gmra.mxu0 %v1374
      %v1472 = vpop.f32.mrf.mxu0
      %v1473 = vadd.f32 0.0, %v1472
      %v1474 = vpop.f32.mrf.mxu0
      %v1475 = vadd.f32 0.0, %v1474
      %1476 = vmatprep.mubr.f32.mxu0 0.0
      %1477 = vmatmul.mubr.f32.gmra.mxu0 %v1377
      %v1478 = vpop.f32.mrf.mxu0
      %v1479 = vadd.f32 0.0, %v1478
      %v1480 = vpop.f32.mrf.mxu0
      %v1481 = vadd.f32 0.0, %v1480
      %1482 = vmatprep.mubr.f32.mxu0 0.0
      %1483 = vmatmul.mubr.f32.gmra.mxu0 %v1380
      %v1484 = vpop.f32.mrf.mxu0
      %v1485 = vadd.f32 0.0, %v1484
      %v1486 = vpop.f32.mrf.mxu0
      %v1487 = vadd.f32 0.0, %v1486
      %1488 = vdwg.mxu0
      %1489 = vmatprep.subr.mxu0 0.0
      %1490 = vmatpush1.msra.mxu0 0.0
      %1491 = vmatprep.subr.mxu0 0.0
      %1492 = vmatpush1.msra.mxu0 0.0
      %1493 = vmatprep.subr.mxu0 0.0
      %1494 = vmatpush1.msra.mxu0 0.0
      %1495 = vmatprep.subr.mxu0 0.0
      %1496 = vmatpush1.msra.mxu0 0.0
      %1497 = vmatprep.subr.mxu0 0.0
      %1498 = vmatpush1.msra.mxu0 0.0
      %1499 = vmatprep.subr.mxu0 0.0
      %1500 = vmatpush1.msra.mxu0 0.0
      %1501 = vmatprep.subr.mxu0 0.0
      %1502 = vmatpush1.msra.mxu0 0.0
      %1503 = vmatprep.subr.mxu0 0.0
      %1504 = vmatpush1.msra.mxu0 0.0
      %1505 = vmatprep.subr.mxu0 %v1353
      %1506 = vmatpush1.msra.mxu0 %v1352
      %1507 = vmatprep.subr.mxu0 %v1349
      %1508 = vmatpush1.msra.mxu0 %v1348
      %1509 = vmatprep.subr.mxu0 %v1345
      %1510 = vmatpush1.msra.mxu0 %v1344
      %1511 = vmatprep.subr.mxu0 %v1341
      %1512 = vmatpush1.msra.mxu0 %v1340
      %1513 = vmatprep.subr.mxu0 %v1337
      %1514 = vmatpush1.msra.mxu0 %v1336
      %1515 = vmatprep.subr.mxu0 %v1333
      %1516 = vmatpush1.msra.mxu0 %v1332
      %1517 = vmatprep.subr.mxu0 %v1329
      %1518 = vmatpush1.msra.mxu0 %v1328
      %1519 = vmatprep.subr.mxu0 %v1325
      %1520 = vmatpush1.msra.mxu0 %v1324
      %1521 = vmatprep.subr.mxu0 0.0
      %1522 = vmatpush2.msra.mxu0 0.0
      %1523 = vmatprep.subr.mxu0 0.0
      %1524 = vmatpush2.msra.mxu0 0.0
      %1525 = vmatprep.subr.mxu0 0.0
      %1526 = vmatpush2.msra.mxu0 0.0
      %1527 = vmatprep.subr.mxu0 0.0
      %1528 = vmatpush2.msra.mxu0 0.0
      %1529 = vmatprep.subr.mxu0 0.0
      %1530 = vmatpush2.msra.mxu0 0.0
      %1531 = vmatprep.subr.mxu0 0.0
      %1532 = vmatpush2.msra.mxu0 0.0
      %1533 = vmatprep.subr.mxu0 0.0
      %1534 = vmatpush2.msra.mxu0 0.0
      %1535 = vmatprep.subr.mxu0 0.0
      %1536 = vmatpush2.msra.mxu0 0.0
      %1537 = vmatprep.subr.mxu0 0.0
      %1538 = vmatpush2.msra.mxu0 0.0
      %1539 = vmatprep.subr.mxu0 0.0
      %1540 = vmatpush2.msra.mxu0 0.0
      %1541 = vmatprep.subr.mxu0 0.0
      %1542 = vmatpush2.msra.mxu0 0.0
      %1543 = vmatprep.subr.mxu0 0.0
      %1544 = vmatpush2.msra.mxu0 0.0
      %1545 = vmatprep.subr.mxu0 0.0
      %1546 = vmatpush2.msra.mxu0 0.0
      %1547 = vmatprep.subr.mxu0 0.0
      %1548 = vmatpush2.msra.mxu0 0.0
      %1549 = vmatprep.subr.mxu0 0.0
      %1550 = vmatpush2.msra.mxu0 0.0
      %1551 = vmatprep.subr.mxu0 0.0
      %1552 = vmatpush2.msra.mxu0 0.0
      %1553 = vmatprep.mubr.f32.mxu0 0.0
      %1554 = vmatmul.mubr.f32.gmra.mxu0 %v1362
      %v1555 = vpop.f32.mrf.mxu0
      %v1556 = vadd.f32 0.0, %v1555
      %v1557 = vpop.f32.mrf.mxu0
      %v1558 = vadd.f32 0.0, %v1557
      %1559 = vmatprep.mubr.f32.mxu0 0.0
      %1560 = vmatmul.mubr.f32.gmra.mxu0 %v1365
      %v1561 = vpop.f32.mrf.mxu0
      %v1562 = vadd.f32 0.0, %v1561
      %v1563 = vpop.f32.mrf.mxu0
      %v1564 = vadd.f32 0.0, %v1563
      %1565 = vmatprep.mubr.f32.mxu0 0.0
      %1566 = vmatmul.mubr.f32.gmra.mxu0 %v1368
      %v1567 = vpop.f32.mrf.mxu0
      %v1568 = vadd.f32 0.0, %v1567
      %v1569 = vpop.f32.mrf.mxu0
      %v1570 = vadd.f32 0.0, %v1569
      %1571 = vmatprep.mubr.f32.mxu0 0.0
      %1572 = vmatmul.mubr.f32.gmra.mxu0 %v1371
      %v1573 = vpop.f32.mrf.mxu0
      %v1574 = vadd.f32 0.0, %v1573
      %v1575 = vpop.f32.mrf.mxu0
      %v1576 = vadd.f32 0.0, %v1575
      %1577 = vmatprep.mubr.f32.mxu0 0.0
      %1578 = vmatmul.mubr.f32.gmra.mxu0 %v1374
      %v1579 = vpop.f32.mrf.mxu0
      %v1580 = vadd.f32 0.0, %v1579
      %v1581 = vpop.f32.mrf.mxu0
      %v1582 = vadd.f32 0.0, %v1581
      %1583 = vmatprep.mubr.f32.mxu0 0.0
      %1584 = vmatmul.mubr.f32.gmra.mxu0 %v1377
      %v1585 = vpop.f32.mrf.mxu0
      %v1586 = vadd.f32 0.0, %v1585
      %v1587 = vpop.f32.mrf.mxu0
      %v1588 = vadd.f32 0.0, %v1587
      %1589 = vmatprep.mubr.f32.mxu0 0.0
      %1590 = vmatmul.mubr.f32.gmra.mxu0 %v1380
      %v1591 = vpop.f32.mrf.mxu0
      %v1592 = vadd.f32 0.0, %v1591
      %v1593 = vpop.f32.mrf.mxu0
      %v1594 = vadd.f32 0.0, %v1593
      %1595 = vdwg.mxu0
      %1596 = vst [vmem:[#allocation3 + $0x8] sm:$0xff] %v1449
      %1597 = vst [vmem:[#allocation3 + $0x10] sm:$0xff] %v1451
      %1598 = vst [vmem:[#allocation3 + $0x18] sm:$0xff] %v1556
      %1599 = vst.msk [vmem:[#allocation3 + $0x20] sm:$0xff] %vm1051, %v1558
      %1600 = vst [vmem:[#allocation3 + $0x38] sm:$0xff] %v1455
      %1601 = vst [vmem:[#allocation3 + $0x40] sm:$0xff] %v1457
      %1602 = vst [vmem:[#allocation3 + $0x48] sm:$0xff] %v1562
      %1603 = vst.msk [vmem:[#allocation3 + $0x50] sm:$0xff] %vm1051, %v1564
      %1604 = vst [vmem:[#allocation3 + $0x68] sm:$0xff] %v1461
      %1605 = vst [vmem:[#allocation3 + $0x70] sm:$0xff] %v1463
      %1606 = vst [vmem:[#allocation3 + $0x78] sm:$0xff] %v1568
      %1607 = vst.msk [vmem:[#allocation3 + $0x80] sm:$0xff] %vm1051, %v1570
      %1608 = vst [vmem:[#allocation3 + $0x98] sm:$0xff] %v1467
      %1609 = vst [vmem:[#allocation3 + $0xa0] sm:$0xff] %v1469
      %1610 = vst [vmem:[#allocation3 + $0xa8] sm:$0xff] %v1574
      %1611 = vst.msk [vmem:[#allocation3 + $0xb0] sm:$0xff] %vm1051, %v1576
      %1612 = vst [vmem:[#allocation3 + $0xc8] sm:$0xff] %v1473
      %1613 = vst [vmem:[#allocation3 + $0xd0] sm:$0xff] %v1475
      %1614 = vst [vmem:[#allocation3 + $0xd8] sm:$0xff] %v1580
      %1615 = vst.msk [vmem:[#allocation3 + $0xe0] sm:$0xff] %vm1051, %v1582
      %1616 = vst [vmem:[#allocation3 + $0xf8] sm:$0xff] %v1479
      %1617 = vst [vmem:[#allocation3 + $0x100] sm:$0xff] %v1481
      %1618 = vst [vmem:[#allocation3 + $0x108] sm:$0xff] %v1586
      %1619 = vst.msk [vmem:[#allocation3 + $0x110] sm:$0xff] %vm1051, %v1588
      %1620 = vst [vmem:[#allocation3 + $0x128] sm:$0x1] %v1485
      %1621 = vst [vmem:[#allocation3 + $0x130] sm:$0x1] %v1487
      %1622 = vst [vmem:[#allocation3 + $0x138] sm:$0x1] %v1592
      %vm1623 = vcmask 811008
      %1624 = vst.msk [vmem:[#allocation3 + $0x140] sm:$0x1] %vm1623, %v1594
      %v1625 = vld [vmem:[#allocation3] ss:$8 sm:$0xf]
      %v1626 = vld [vmem:[#allocation3] ss:$8 sm:$0x10]
      %v1627 = vor.u32 %v1625, %v1626
      %v1628 = vadd.f32 %v1627, 0.0
      %s1629 = scalar_lea.vmem [#allocation3], 1
      %v1630 = vld [vmem:[%s1629] ss:$8 sm:$0xf]
      %v1631 = vld [vmem:[%s1629] ss:$8 sm:$0x10]
      %v1632 = vor.u32 %v1630, %v1631
      %1634 = vrot.lane.b32.xlu0 %v1632, 127
      %v1635 = vpop.permute.xlu0 %1634
      %v1636 = vrot.slane %v1635, 1
      %v1637 = vsel %vm472, %v1635, %v1636
      %v1639 = vadd.f32 %v1628, %v1637
      %s1640 = scalar_lea.vmem [#allocation3], 2
      %v1641 = vld [vmem:[%s1640] ss:$8 sm:$0xf]
      %v1642 = vld [vmem:[%s1640] ss:$8 sm:$0x10]
      %v1643 = vor.u32 %v1641, %v1642
      %1645 = vrot.lane.b32.xlu0 %v1643, 126
      %v1646 = vpop.permute.xlu0 %1645
      %v1647 = vrot.slane %v1646, 1
      %v1648 = vsel %vm482, %v1646, %v1647
      %v1650 = vadd.f32 %v1639, %v1648
      %s1651 = scalar_lea.vmem [#allocation3], 3
      %v1652 = vld [vmem:[%s1651] ss:$8 sm:$0xf]
      %v1653 = vld [vmem:[%s1651] ss:$8 sm:$0x10]
      %v1654 = vor.u32 %v1652, %v1653
      %1656 = vrot.lane.b32.xlu0 %v1654, 125
      %v1657 = vpop.permute.xlu0 %1656
      %v1658 = vrot.slane %v1657, 1
      %v1659 = vsel %vm492, %v1657, %v1658
      %v1661 = vadd.f32 %v1650, %v1659
      %s1662 = scalar_lea.vmem [#allocation3], 4
      %v1663 = vld [vmem:[%s1662] ss:$8 sm:$0xf]
      %v1664 = vld [vmem:[%s1662] ss:$8 sm:$0x10]
      %v1665 = vor.u32 %v1663, %v1664
      %1667 = vrot.lane.b32.xlu0 %v1665, 124
      %v1668 = vpop.permute.xlu0 %1667
      %v1669 = vrot.slane %v1668, 1
      %vm1670 = vcmask 1014784
      %v1671 = vsel %vm1670, %v1668, %v1669
      %v1673 = vadd.f32 %v1661, %v1671
      %s1674 = scalar_lea.vmem [#allocation3], 5
      %v1675 = vld [vmem:[%s1674] ss:$8 sm:$0xf]
      %v1676 = vld [vmem:[%s1674] ss:$8 sm:$0x10]
      %v1677 = vor.u32 %v1675, %v1676
      %1679 = vrot.lane.b32.xlu0 %v1677, 123
      %v1680 = vpop.permute.xlu0 %1679
      %v1681 = vrot.slane %v1680, 1
      %vm1682 = vcmask 1006592
      %v1683 = vsel %vm1682, %v1680, %v1681
      %v1685 = vadd.f32 %v1673, %v1683
      %s1686 = scalar_lea.vmem [#allocation3], 6
      %v1687 = vld [vmem:[%s1686] ss:$8 sm:$0xf]
      %v1688 = vld [vmem:[%s1686] ss:$8 sm:$0x10]
      %v1689 = vor.u32 %v1687, %v1688
      %1691 = vrot.lane.b32.xlu0 %v1689, 122
      %v1692 = vpop.permute.xlu0 %1691
      %v1693 = vrot.slane %v1692, 1
      %vm1694 = vcmask 998400
      %v1695 = vsel %vm1694, %v1692, %v1693
      %v1697 = vadd.f32 %v1685, %v1695
      %s1698 = scalar_lea.vmem [#allocation3], 7
      %v1699 = vld [vmem:[%s1698] ss:$8 sm:$0xf]
      %v1700 = vld [vmem:[%s1698] ss:$8 sm:$0x10]
      %v1701 = vor.u32 %v1699, %v1700
      %1703 = vrot.lane.b32.xlu0 %v1701, 106
      %v1704 = vpop.permute.xlu0 %1703
      %v1705 = vrot.slane %v1704, 1
      %v1706 = vsel %vm532, %v1704, %v1705
      %v1708 = vadd.f32 %v1697, %v1706
      %s1709 = scalar_lea.vmem [#allocation3], 48
      %v1710 = vld [vmem:[%s1709] ss:$8 sm:$0xf]
      %v1711 = vld [vmem:[%s1709] ss:$8 sm:$0x10]
      %v1712 = vor.u32 %v1710, %v1711
      %1714 = vrot.lane.b32.xlu0 %v1712, 105
      %v1715 = vpop.permute.xlu0 %1714
      %v1716 = vrot.slane %v1715, 1
      %v1717 = vsel %vm542, %v1715, %v1716
      %v1719 = vadd.f32 %v1708, %v1717
      %s1720 = scalar_lea.vmem [#allocation3], 49
      %v1721 = vld [vmem:[%s1720] ss:$8 sm:$0xf]
      %v1722 = vld [vmem:[%s1720] ss:$8 sm:$0x10]
      %v1723 = vor.u32 %v1721, %v1722
      %1725 = vrot.lane.b32.xlu0 %v1723, 104
      %v1726 = vpop.permute.xlu0 %1725
      %v1727 = vrot.slane %v1726, 1
      %v1728 = vsel %vm552, %v1726, %v1727
      %v1730 = vadd.f32 %v1719, %v1728
      %s1731 = scalar_lea.vmem [#allocation3], 50
      %v1732 = vld [vmem:[%s1731] ss:$8 sm:$0xf]
      %v1733 = vld [vmem:[%s1731] ss:$8 sm:$0x10]
      %v1734 = vor.u32 %v1732, %v1733
      %1736 = vrot.lane.b32.xlu0 %v1734, 103
      %v1737 = vpop.permute.xlu0 %1736
      %v1738 = vrot.slane %v1737, 1
      %v1739 = vsel %vm562, %v1737, %v1738
      %v1741 = vadd.f32 %v1730, %v1739
      %s1742 = scalar_lea.vmem [#allocation3], 51
      %v1743 = vld [vmem:[%s1742] ss:$8 sm:$0xf]
      %v1744 = vld [vmem:[%s1742] ss:$8 sm:$0x10]
      %v1745 = vor.u32 %v1743, %v1744
      %1747 = vrot.lane.b32.xlu0 %v1745, 102
      %v1748 = vpop.permute.xlu0 %1747
      %v1749 = vrot.slane %v1748, 1
      %vm1750 = vcmask 834560
      %v1751 = vsel %vm1750, %v1748, %v1749
      %v1753 = vadd.f32 %v1741, %v1751
      %s1754 = scalar_lea.vmem [#allocation3], 52
      %v1755 = vld [vmem:[%s1754] ss:$8 sm:$0xf]
      %v1756 = vld [vmem:[%s1754] ss:$8 sm:$0x10]
      %v1757 = vor.u32 %v1755, %v1756
      %1759 = vrot.lane.b32.xlu0 %v1757, 101
      %v1760 = vpop.permute.xlu0 %1759
      %v1761 = vrot.slane %v1760, 1
      %vm1762 = vcmask 826368
      %v1763 = vsel %vm1762, %v1760, %v1761
      %v1765 = vadd.f32 %v1753, %v1763
      %s1766 = scalar_lea.vmem [#allocation3], 53
      %v1767 = vld [vmem:[%s1766] ss:$8 sm:$0xf]
      %v1768 = vld [vmem:[%s1766] ss:$8 sm:$0x10]
      %v1769 = vor.u32 %v1767, %v1768
      %1771 = vrot.lane.b32.xlu0 %v1769, 100
      %v1772 = vpop.permute.xlu0 %1771
      %v1773 = vrot.slane %v1772, 1
      %v1774 = vsel %vm1051, %v1772, %v1773
      %v1776 = vadd.f32 %v1765, %v1774
      %s1777 = scalar_lea.vmem [#allocation3], 54
      %v1778 = vld [vmem:[%s1777] ss:$8 sm:$0xf]
      %v1779 = vld [vmem:[%s1777] ss:$8 sm:$0x10]
      %v1780 = vor.u32 %v1778, %v1779
      %1782 = vrot.lane.b32.xlu0 %v1780, 84
      %v1783 = vpop.permute.xlu0 %1782
      %v1784 = vrot.slane %v1783, 1
      %v1785 = vsel %vm602, %v1783, %v1784
      %v1787 = vadd.f32 %v1776, %v1785
      %s1788 = scalar_lea.vmem [#allocation3], 55
      %v1789 = vld [vmem:[%s1788] ss:$8 sm:$0xf]
      %v1790 = vld [vmem:[%s1788] ss:$8 sm:$0x10]
      %v1791 = vor.u32 %v1789, %v1790
      %1793 = vrot.lane.b32.xlu0 %v1791, 83
      %v1794 = vpop.permute.xlu0 %1793
      %v1795 = vrot.slane %v1794, 1
      %v1796 = vsel %vm612, %v1794, %v1795
      %v1798 = vadd.f32 %v1787, %v1796
      %s1799 = scalar_lea.vmem [#allocation3], 96
      %v1800 = vld [vmem:[%s1799] ss:$8 sm:$0xf]
      %v1801 = vld [vmem:[%s1799] ss:$8 sm:$0x10]
      %v1802 = vor.u32 %v1800, %v1801
      %1804 = vrot.lane.b32.xlu0 %v1802, 82
      %v1805 = vpop.permute.xlu0 %1804
      %v1806 = vrot.slane %v1805, 1
      %v1807 = vsel %vm622, %v1805, %v1806
      %v1809 = vadd.f32 %v1798, %v1807
      %s1810 = scalar_lea.vmem [#allocation3], 97
      %v1811 = vld [vmem:[%s1810] ss:$8 sm:$0xf]
      %v1812 = vld [vmem:[%s1810] ss:$8 sm:$0x10]
      %v1813 = vor.u32 %v1811, %v1812
      %1815 = vrot.lane.b32.xlu0 %v1813, 81
      %v1816 = vpop.permute.xlu0 %1815
      %v1817 = vrot.slane %v1816, 1
      %v1818 = vsel %vm632, %v1816, %v1817
      %v1820 = vadd.f32 %v1809, %v1818
      %s1821 = scalar_lea.vmem [#allocation3], 98
      %v1822 = vld [vmem:[%s1821] ss:$8 sm:$0xf]
      %v1823 = vld [vmem:[%s1821] ss:$8 sm:$0x10]
      %v1824 = vor.u32 %v1822, %v1823
      %1826 = vrot.lane.b32.xlu0 %v1824, 80
      %v1827 = vpop.permute.xlu0 %1826
      %v1828 = vrot.slane %v1827, 1
      %vm1829 = vcmask 654336
      %v1830 = vsel %vm1829, %v1827, %v1828
      %v1832 = vadd.f32 %v1820, %v1830
      %s1833 = scalar_lea.vmem [#allocation3], 99
      %v1834 = vld [vmem:[%s1833] ss:$8 sm:$0xf]
      %v1835 = vld [vmem:[%s1833] ss:$8 sm:$0x10]
      %v1836 = vor.u32 %v1834, %v1835
      %1838 = vrot.lane.b32.xlu0 %v1836, 79
      %v1839 = vpop.permute.xlu0 %1838
      %v1840 = vrot.slane %v1839, 1
      %vm1841 = vcmask 646144
      %v1842 = vsel %vm1841, %v1839, %v1840
      %v1844 = vadd.f32 %v1832, %v1842
      %s1845 = scalar_lea.vmem [#allocation3], 100
      %v1846 = vld [vmem:[%s1845] ss:$8 sm:$0xf]
      %v1847 = vld [vmem:[%s1845] ss:$8 sm:$0x10]
      %v1848 = vor.u32 %v1846, %v1847
      %1850 = vrot.lane.b32.xlu0 %v1848, 78
      %v1851 = vpop.permute.xlu0 %1850
      %v1852 = vrot.slane %v1851, 1
      %vm1853 = vcmask 637952
      %v1854 = vsel %vm1853, %v1851, %v1852
      %v1856 = vadd.f32 %v1844, %v1854
      %s1857 = scalar_lea.vmem [#allocation3], 101
      %v1858 = vld [vmem:[%s1857] ss:$8 sm:$0xf]
      %v1859 = vld [vmem:[%s1857] ss:$8 sm:$0x10]
      %v1860 = vor.u32 %v1858, %v1859
      %1862 = vrot.lane.b32.xlu0 %v1860, 62
      %v1863 = vpop.permute.xlu0 %1862
      %v1864 = vrot.slane %v1863, 1
      %v1865 = vsel %vm660, %v1863, %v1864
      %v1867 = vadd.f32 %v1856, %v1865
      %s1868 = scalar_lea.vmem [#allocation3], 102
      %v1869 = vld [vmem:[%s1868] ss:$8 sm:$0xf]
      %v1870 = vld [vmem:[%s1868] ss:$8 sm:$0x10]
      %v1871 = vor.u32 %v1869, %v1870
      %1873 = vrot.lane.b32.xlu0 %v1871, 61
      %v1874 = vpop.permute.xlu0 %1873
      %v1875 = vrot.slane %v1874, 1
      %v1876 = vsel %vm670, %v1874, %v1875
      %v1878 = vadd.f32 %v1867, %v1876
      %s1879 = scalar_lea.vmem [#allocation3], 103
      %v1880 = vld [vmem:[%s1879] ss:$8 sm:$0xf]
      %v1881 = vld [vmem:[%s1879] ss:$8 sm:$0x10]
      %v1882 = vor.u32 %v1880, %v1881
      %1884 = vrot.lane.b32.xlu0 %v1882, 60
      %v1885 = vpop.permute.xlu0 %1884
      %v1886 = vrot.slane %v1885, 1
      %v1887 = vsel %vm680, %v1885, %v1886
      %v1889 = vadd.f32 %v1878, %v1887
      %s1890 = scalar_lea.vmem [#allocation3], 152
      %v1891 = vld [vmem:[%s1890] ss:$8 sm:$0xf]
      %1893 = vrot.lane.b32.xlu0 %v1891, 59
      %v1894 = vpop.permute.xlu0 %1893
      %v1895 = vrot.slane %v1894, 7
      %v1896 = vsel %vm690, %v1895, %v1894
      %v1898 = vadd.f32 %v1889, %v1896
      %s1899 = scalar_lea.vmem [#allocation3], 153
      %v1900 = vld [vmem:[%s1899] ss:$8 sm:$0xf]
      %1902 = vrot.lane.b32.xlu0 %v1900, 58
      %v1903 = vpop.permute.xlu0 %1902
      %v1904 = vrot.slane %v1903, 7
      %vm1905 = vcmask 474112
      %v1906 = vsel %vm1905, %v1904, %v1903
      %v1908 = vadd.f32 %v1898, %v1906
      %s1909 = scalar_lea.vmem [#allocation3], 154
      %v1910 = vld [vmem:[%s1909] ss:$8 sm:$0xf]
      %1912 = vrot.lane.b32.xlu0 %v1910, 57
      %v1913 = vpop.permute.xlu0 %1912
      %v1914 = vrot.slane %v1913, 7
      %vm1915 = vcmask 465920
      %v1916 = vsel %vm1915, %v1914, %v1913
      %v1918 = vadd.f32 %v1908, %v1916
      %s1919 = scalar_lea.vmem [#allocation3], 155
      %v1920 = vld [vmem:[%s1919] ss:$8 sm:$0xf]
      %1922 = vrot.lane.b32.xlu0 %v1920, 56
      %v1923 = vpop.permute.xlu0 %1922
      %v1924 = vrot.slane %v1923, 7
      %vm1925 = vcmask 457728
      %v1926 = vsel %vm1925, %v1924, %v1923
      %v1928 = vadd.f32 %v1918, %v1926
      %s1929 = scalar_lea.vmem [#allocation3], 156
      %v1930 = vld [vmem:[%s1929] ss:$8 sm:$0xf]
      %1932 = vrot.lane.b32.xlu0 %v1930, 40
      %v1933 = vpop.permute.xlu0 %1932
      %v1934 = vrot.slane %v1933, 7
      %vm1935 = vcmask 326656
      %v1936 = vsel %vm1935, %v1934, %v1933
      %v1938 = vadd.f32 %v1928, %v1936
      %s1939 = scalar_lea.vmem [#allocation3], 157
      %v1940 = vld [vmem:[%s1939] ss:$8 sm:$0xf]
      %1942 = vrot.lane.b32.xlu0 %v1940, 39
      %v1943 = vpop.permute.xlu0 %1942
      %v1944 = vrot.slane %v1943, 7
      %vm1945 = vcmask 318464
      %v1946 = vsel %vm1945, %v1944, %v1943
      %v1948 = vadd.f32 %v1938, %v1946
      %s1949 = scalar_lea.vmem [#allocation3], 158
      %v1950 = vld [vmem:[%s1949] ss:$8 sm:$0xf]
      %1952 = vrot.lane.b32.xlu0 %v1950, 38
      %v1953 = vpop.permute.xlu0 %1952
      %v1954 = vrot.slane %v1953, 7
      %vm1955 = vcmask 310272
      %v1956 = vsel %vm1955, %v1954, %v1953
      %v1958 = vadd.f32 %v1948, %v1956
      %s1959 = scalar_lea.vmem [#allocation3], 159
      %v1960 = vld [vmem:[%s1959] ss:$8 sm:$0xf]
      %1962 = vrot.lane.b32.xlu0 %v1960, 37
      %v1963 = vpop.permute.xlu0 %1962
      %v1964 = vrot.slane %v1963, 7
      %vm1965 = vcmask 302080
      %v1966 = vsel %vm1965, %v1964, %v1963
      %v1968 = vadd.f32 %v1958, %v1966
      %s1969 = scalar_lea.vmem [#allocation3], 200
      %v1970 = vld [vmem:[%s1969] ss:$8 sm:$0xf]
      %1972 = vrot.lane.b32.xlu0 %v1970, 36
      %v1973 = vpop.permute.xlu0 %1972
      %v1974 = vrot.slane %v1973, 7
      %vm1975 = vcmask 293888
      %v1976 = vsel %vm1975, %v1974, %v1973
      %v1978 = vadd.f32 %v1968, %v1976
      %s1979 = scalar_lea.vmem [#allocation3], 201
      %v1980 = vld [vmem:[%s1979] ss:$8 sm:$0xf]
      %1982 = vrot.lane.b32.xlu0 %v1980, 35
      %v1983 = vpop.permute.xlu0 %1982
      %v1984 = vrot.slane %v1983, 7
      %vm1985 = vcmask 285696
      %v1986 = vsel %vm1985, %v1984, %v1983
      %v1988 = vadd.f32 %v1978, %v1986
      %s1989 = scalar_lea.vmem [#allocation3], 202
      %v1990 = vld [vmem:[%s1989] ss:$8 sm:$0xf]
      %1992 = vrot.lane.b32.xlu0 %v1990, 34
      %v1993 = vpop.permute.xlu0 %1992
      %v1994 = vrot.slane %v1993, 7
      %vm1995 = vcmask 277504
      %v1996 = vsel %vm1995, %v1994, %v1993
      %v1998 = vadd.f32 %v1988, %v1996
      %s1999 = scalar_lea.vmem [#allocation3], 203
      %v2000 = vld [vmem:[%s1999] ss:$8 sm:$0xf]
      %v2001 = vld [vmem:[%s1999] ss:$8 sm:$0x10]
      %v2002 = vor.u32 %v2000, %v2001
      %2004 = vrot.lane.b32.xlu0 %v2002, 18
      %v2005 = vpop.permute.xlu0 %2004
      %v2006 = vrot.slane %v2005, 7
      %vm2007 = vcmask 146432
      %v2008 = vsel %vm2007, %v2006, %v2005
      %v2010 = vadd.f32 %v1998, %v2008
      %s2011 = scalar_lea.vmem [#allocation3], 204
      %v2012 = vld [vmem:[%s2011] ss:$8 sm:$0xf]
      %v2013 = vld [vmem:[%s2011] ss:$8 sm:$0x10]
      %v2014 = vor.u32 %v2012, %v2013
      %2016 = vrot.lane.b32.xlu0 %v2014, 17
      %v2017 = vpop.permute.xlu0 %2016
      %v2018 = vrot.slane %v2017, 7
      %vm2019 = vcmask 138240
      %v2020 = vsel %vm2019, %v2018, %v2017
      %v2022 = vadd.f32 %v2010, %v2020
      %s2023 = scalar_lea.vmem [#allocation3], 205
      %v2024 = vld [vmem:[%s2023] ss:$8 sm:$0xf]
      %v2025 = vld [vmem:[%s2023] ss:$8 sm:$0x10]
      %v2026 = vor.u32 %v2024, %v2025
      %2028 = vrot.lane.b32.xlu0 %v2026, 16
      %v2029 = vpop.permute.xlu0 %2028
      %v2030 = vrot.slane %v2029, 7
      %vm2031 = vcmask 130048
      %v2032 = vsel %vm2031, %v2030, %v2029
      %v2034 = vadd.f32 %v2022, %v2032
      %s2035 = scalar_lea.vmem [#allocation3], 206
      %v2036 = vld [vmem:[%s2035] ss:$8 sm:$0xf]
      %v2037 = vld [vmem:[%s2035] ss:$8 sm:$0x10]
      %v2038 = vor.u32 %v2036, %v2037
      %2040 = vrot.lane.b32.xlu0 %v2038, 15
      %v2041 = vpop.permute.xlu0 %2040
      %v2042 = vrot.slane %v2041, 7
      %vm2043 = vcmask 121856
      %v2044 = vsel %vm2043, %v2042, %v2041
      %v2046 = vadd.f32 %v2034, %v2044
      %s2047 = scalar_lea.vmem [#allocation3], 207
      %v2048 = vld [vmem:[%s2047] ss:$8 sm:$0xf]
      %v2049 = vld [vmem:[%s2047] ss:$8 sm:$0x10]
      %v2050 = vor.u32 %v2048, %v2049
      %2052 = vrot.lane.b32.xlu0 %v2050, 14
      %v2053 = vpop.permute.xlu0 %2052
      %v2054 = vrot.slane %v2053, 7
      %vm2055 = vcmask 113664
      %v2056 = vsel %vm2055, %v2054, %v2053
      %v2058 = vadd.f32 %v2046, %v2056
      %s2059 = scalar_lea.vmem [#allocation3], 248
      %v2060 = vld [vmem:[%s2059] ss:$8 sm:$0xf]
      %v2061 = vld [vmem:[%s2059] ss:$8 sm:$0x10]
      %v2062 = vor.u32 %v2060, %v2061
      %2064 = vrot.lane.b32.xlu0 %v2062, 13
      %v2065 = vpop.permute.xlu0 %2064
      %v2066 = vrot.slane %v2065, 7
      %vm2067 = vcmask 105472
      %v2068 = vsel %vm2067, %v2066, %v2065
      %v2070 = vadd.f32 %v2058, %v2068
      %s2071 = scalar_lea.vmem [#allocation3], 249
      %v2072 = vld [vmem:[%s2071] ss:$8 sm:$0xf]
      %v2073 = vld [vmem:[%s2071] ss:$8 sm:$0x10]
      %v2074 = vor.u32 %v2072, %v2073
      %2076 = vrot.lane.b32.xlu0 %v2074, 12
      %v2077 = vpop.permute.xlu0 %2076
      %v2078 = vrot.slane %v2077, 7
      %vm2079 = vcmask 97280
      %v2080 = vsel %vm2079, %v2078, %v2077
      %v2082 = vadd.f32 %v2070, %v2080
      %s2083 = scalar_lea.vmem [#allocation3], 250
      %v2084 = vld [vmem:[%s2083] ss:$8 sm:$0xf]
      %v2085 = vld [vmem:[%s2083] ss:$8 sm:$0x10]
      %v2086 = vor.u32 %v2084, %v2085
      %2088 = vrot.lane.b32.xlu0 %v2086, 124
      %v2089 = vpop.permute.xlu0 %2088
      %v2090 = vrot.slane %v2089, 1
      %v2091 = vsel %vm1670, %v2089, %v2090
      %v2093 = vadd.f32 %v2082, %v2091
      %s2094 = scalar_lea.vmem [#allocation3], 251
      %v2095 = vld [vmem:[%s2094] ss:$8 sm:$0xf]
      %v2096 = vld [vmem:[%s2094] ss:$8 sm:$0x10]
      %v2097 = vor.u32 %v2095, %v2096
      %2099 = vrot.lane.b32.xlu0 %v2097, 123
      %v2100 = vpop.permute.xlu0 %2099
      %v2101 = vrot.slane %v2100, 1
      %v2102 = vsel %vm1682, %v2100, %v2101
      %v2104 = vadd.f32 %v2093, %v2102
      %s2105 = scalar_lea.vmem [#allocation3], 252
      %v2106 = vld [vmem:[%s2105] ss:$8 sm:$0xf]
      %v2107 = vld [vmem:[%s2105] ss:$8 sm:$0x10]
      %v2108 = vor.u32 %v2106, %v2107
      %2110 = vrot.lane.b32.xlu0 %v2108, 122
      %v2111 = vpop.permute.xlu0 %2110
      %v2112 = vrot.slane %v2111, 1
      %v2113 = vsel %vm1694, %v2111, %v2112
      %v2115 = vadd.f32 %v2104, %v2113
      %s2116 = scalar_lea.vmem [#allocation3], 253
      %v2117 = vld [vmem:[%s2116] ss:$8 sm:$0xf]
      %v2118 = vld [vmem:[%s2116] ss:$8 sm:$0x10]
      %v2119 = vor.u32 %v2117, %v2118
      %2121 = vrot.lane.b32.xlu0 %v2119, 121
      %v2122 = vpop.permute.xlu0 %2121
      %v2123 = vrot.slane %v2122, 1
      %vm2124 = vcmask 990208
      %v2125 = vsel %vm2124, %v2122, %v2123
      %v2127 = vadd.f32 %v2115, %v2125
      %s2128 = scalar_lea.vmem [#allocation3], 254
      %v2129 = vld [vmem:[%s2128] ss:$8 sm:$0xf]
      %v2130 = vld [vmem:[%s2128] ss:$8 sm:$0x10]
      %v2131 = vor.u32 %v2129, %v2130
      %2133 = vrot.lane.b32.xlu0 %v2131, 120
      %v2134 = vpop.permute.xlu0 %2133
      %v2135 = vrot.slane %v2134, 1
      %vm2136 = vcmask 982016
      %v2137 = vsel %vm2136, %v2134, %v2135
      %v2139 = vadd.f32 %v2127, %v2137
      %s2140 = scalar_lea.vmem [#allocation3], 255
      %v2141 = vld [vmem:[%s2140] ss:$8 sm:$0xf]
      %v2142 = vld [vmem:[%s2140] ss:$8 sm:$0x10]
      %v2143 = vor.u32 %v2141, %v2142
      %2145 = vrot.lane.b32.xlu0 %v2143, 119
      %v2146 = vpop.permute.xlu0 %2145
      %v2147 = vrot.slane %v2146, 1
      %vm2148 = vcmask 973824
      %v2149 = vsel %vm2148, %v2146, %v2147
      %v2151 = vadd.f32 %v2139, %v2149
      %s2152 = scalar_lea.vmem [#allocation3], 296
      %v2153 = vld [vmem:[%s2152] ss:$8 sm:$0xf]
      %v2154 = vld [vmem:[%s2152] ss:$8 sm:$0x10]
      %v2155 = vor.u32 %v2153, %v2154
      %2157 = vrot.lane.b32.xlu0 %v2155, 118
      %v2158 = vpop.permute.xlu0 %2157
      %v2159 = vrot.slane %v2158, 1
      %vm2160 = vcmask 965632
      %v2161 = vsel %vm2160, %v2158, %v2159
      %v2163 = vadd.f32 %v2151, %v2161
      %v2164 = vtanh.pop %v2163
      %2166 = vrot.lane.b32.xlu0 %v2164, 69
      %v2167 = vpop.permute.xlu0 %2166
      %v2168 = vrot.slane %v2167, 1
      %v2169 = vsel %vm247, %v2167, %v2168
      %2171 = vst.msk [vmem:[%s192] sm:$0xf] %vm253, %v2169
      %p2172 = scmp.lt.s32.totalorder %s15, 1
      %s2173 = scalar_select %p2172, %s15, 1
      %s2174 = smul.addr %s2173, 4
      %s2175 = scalar_lea.vmem %s4, %s2174
      // Predicated region
      $region41: #{generator_forward.1} parent=35 // pred_check
        %p2176 = pneg %p122
      $region42: #{generator_forward.1} parent=35 // pred_check_branch
        %2178 = sbr.rel (%p2176) target = $region44
      $region43: #{generator_forward.1} parent=35 // pred_region
        _
      $region44: #{generator_forward.1} parent=35 // pred_fallthru
        _
    $region36: #{generator_forward.1} parent=5 // pred_fallthru
      _
    %p2179 = scmp.le.s32.totalorder 2, %s10
    // Predicated region
    $region45: #{generator_forward.1} parent=5 // pred_check
      %p2180 = pneg %p2179
    $region46: #{generator_forward.1} parent=5 // pred_check_branch
      %2182 = sbr.rel (%p2180) target = $region48
    $region47: #{generator_forward.1} parent=5 // pred_region
      %s2183 = ssub.s32 %s10, 2
      // Predicated region
      $region49: #{generator_forward.1} parent=47 // pred_check
        %p2184 = pneg %p128
      $region50: #{generator_forward.1} parent=47 // pred_check_branch
        %2186 = sbr.rel (%p2184) target = $region52
      $region51: #{generator_forward.1} parent=47 // pred_region
        %p2187 = scmp.lt.s32.totalorder %s16, 1
        %s2188 = scalar_select %p2187, %s16, 1
        %s2189 = smul.addr %s2188, 4
        %s2190 = scalar_lea.vmem %s4, %s2189
      $region52: #{generator_forward.1} parent=47 // pred_fallthru
        _
    $region48: #{generator_forward.1} parent=5 // pred_fallthru
      _
  $region6: #{generator_forward.1} parent=0 // loop_footer
    %s14 = sadd.s32 1, %s10
  $region7: #{generator_forward.1} parent=0 // loop_footer_branch
    %9 = sbr.rel target = $region3
  $region8: #{generator_forward.1} parent=0 // loop_exit
    _

</llo_original>
